<compile_context>
chip_gen: v7x
topology: tpu7x:2x2x1
jax: 0.10.0
libtpu: 0.0.40
codegen_flags: <defaults>
</compile_context>

<pallas_src>
import jax
import jax.numpy as jnp
from jax.experimental import pallas as pl
from jax.experimental.pallas import tpu as pltpu


# ----------------------------- config / hparams ------------------------------
MEL_CHANNELS = 8          # config.mel_channels   (small, synthetic)
FFT_CHANNELS = 16         # config.fft_channels
IN_SEQ = 16               # config.speak_seq_len
OUT_SEQ = 24              # config.speak_stft_seq_len
INIT_K = OUT_SEQ - IN_SEQ + 1   # kernel of the "upper" ConvTranspose1d

CH0 = 16                  # hparams.ch0
KERNEL0 = 3               # hparams.kernel0
NUM_LAYER0 = 2            # hparams.num_layer0 (dilations 1, 2, ...)
CH1 = 32                  # hparams.ch1
KERNEL1 = 3               # hparams.kernel1
NUM_RESLAYERS = 2         # hparams.num_reslayers
DIVISOR = 2               # hparams.divisor
KERNEL2 = 3               # hparams.kernel2

BATCH = 2


def _total_left_pad():
    """Total causal/transpose padding consumed by the whole network (= 26)."""
    pad = INIT_K - 1                                        # upper (shifts 0..K-1)
    pad += sum((KERNEL0 - 1) * (2 ** i) for i in range(NUM_LAYER0))
    pad += (KERNEL1 - 1)                                    # layer1 projection
    pad += 2 * NUM_RESLAYERS * (KERNEL1 - 1)                # res blocks
    pad += (KERNEL2 - 1)                                    # layer2
    return pad


_LEAD = _total_left_pad()          # 26 leading zero lanes per batch frame
_FRAME_W = 64                      # per-batch frame width (>= LEAD + OUT_SEQ = 50), rounded up
_TOTAL_W = BATCH * _FRAME_W        # so the folded frame is exactly 128 lanes (one vreg row)
assert _FRAME_W >= _LEAD + OUT_SEQ
assert _FRAME_W >= _LEAD + IN_SEQ + (INIT_K - 1)
assert _TOTAL_W % 128 == 0


# Static per-layer topology: (cout, cin, shifts) where tap j multiplies x[t - shifts[j]].
def _make_layer_defs():
    defs = [(MEL_CHANNELS, MEL_CHANNELS, tuple(range(INIT_K)))]      # "upper" ConvTranspose1d
    cin = MEL_CHANNELS
    # TODO(synk): DilatedCausalConv1d source not provided; assumed: num_layer0 causal convs,
    # dilation 2**i, ReLU after each.
    for i in range(NUM_LAYER0):
        d = 2 ** i
        defs.append((CH0, cin, tuple((KERNEL0 - 1 - k) * d for k in range(KERNEL0))))
        cin = CH0
    # TODO(synk): nResBlocks1d source not provided; assumed: causal projection ch0->ch1 (+ReLU),
    # then num_reslayers blocks of  h = relu(conv1(x)); x = relu(x + conv2(h)).
    defs.append((CH1, CH0, tuple(KERNEL1 - 1 - k for k in range(KERNEL1))))
    mid = CH1 // DIVISOR
    for _ in range(NUM_RESLAYERS):
        defs.append((mid, CH1, tuple(KERNEL1 - 1 - k for k in range(KERNEL1))))
        defs.append((CH1, mid, tuple(KERNEL1 - 1 - k for k in range(KERNEL1))))
    defs.append((FFT_CHANNELS, CH1, tuple(KERNEL2 - 1 - k for k in range(KERNEL2))))  # layer2
    return tuple(defs)


_LAYER_DEFS = _make_layer_defs()
assert all(max(s) <= _LEAD for (_, _, s) in _LAYER_DEFS)   # per-layer reach fits the lead zeros

# Parameter-slab layout: one lane-dense f32 slab (_SLAB_ROWS, 128). Layer L occupies rows
# [row_off, row_off + cout): im2col weight (cout, K*cin) in lanes [0, K*cin), bias in lane 127.
_SLAB_LANES = 128
_BIAS_COL = _SLAB_LANES - 1
_ROW_OFFS = []
_off = 0
for (_cout, _cin, _shifts) in _LAYER_DEFS:
    assert len(_shifts) * _cin < _BIAS_COL
    _ROW_OFFS.append(_off)
    _off += _cout
_ROW_OFFS = tuple(_ROW_OFFS)
_SLAB_ROWS = _off                                           # 184 rows (multiple of 8)


# ------------------------------- fused kernel --------------------------------
def _generator_kernel(x_ref, slab_ref, o_ref, frame_ref):
    # In-VMEM padding: zero the batch-folded frame and drop both batch inputs into their slots.
    frame_ref[...] = jnp.zeros(frame_ref.shape, frame_ref.dtype)
    for b in range(BATCH):
        off = b * _FRAME_W + _LEAD
        frame_ref[:, off:off + IN_SEQ] = x_ref[b].astype(frame_ref.dtype)
    h = frame_ref[...]                                      # (MEL, 128), f32

    # Hoisted causal-padding mask (built once, reused by every layer): lanes
    # [b*FRAME_W, b*FRAME_W + LEAD) of every per-batch frame are forced to exact zeros.
    col = jax.lax.broadcasted_iota(jnp.int32, (1, _TOTAL_W), 1)
    keep = (col % _FRAME_W) >= _LEAD                        # (1, 128) bool

    def conv(h, layer_idx, *, relu, residual=None, mask=True):
        row0 = _ROW_OFFS[layer_idx]
        cout, cin, shifts = _LAYER_DEFS[layer_idx]
        kcin = len(shifts) * cin
        w = slab_ref[row0:row0 + cout, 0:kcin]              # (cout, K*cin) static slice of slab
        bias = slab_ref[row0:row0 + cout, _BIAS_COL:_BIAS_COL + 1]   # (cout, 1)
        # im2col along sublanes: tap j reads x[t - shifts[j]] via a lane roll; roll wrap-around
        # lands inside the other batch's lead region, which `keep` re-zeroes below.
        taps = [h if s == 0 else pltpu.roll(h, shift=s, axis=1) for s in shifts]
        stacked = jnp.concatenate(taps, axis=0) if len(taps) > 1 else taps[0]   # (K*cin, 128)
        out = jnp.dot(w, stacked, preferred_element_type=jnp.float32) + bias    # 1 MXU matmul
        if residual is not None:
            out = out + residual                            # same width/alignment — plain add
        if relu:
            out = jnp.maximum(out, 0.0)
        if mask:
            out = jnp.where(keep, out, 0.0)                 # exact zeros in the causal-pad lanes
        return out

    li = 0
    h = conv(h, li, relu=False); li += 1                    # upper: ConvTranspose1d, no activation
    for _ in range(NUM_LAYER0):                             # layer0: dilated causal convs + ReLU
        h = conv(h, li, relu=True); li += 1
    h = conv(h, li, relu=True); li += 1                     # layer1: ch0->ch1 projection + ReLU
    for _ in range(NUM_RESLAYERS):                          # residual blocks
        res = h
        hm = conv(h, li, relu=True); li += 1
        h = conv(hm, li, relu=True, residual=res); li += 1  # relu(res + conv(hm) + b)
    h = conv(h, li, relu=True, mask=False); li += 1         # layer2 fused with final nn.ReLU()

    assert li == len(_LAYER_DEFS) and h.shape == (FFT_CHANNELS, _TOTAL_W)

    # Lane-dense single store: valid OUT_SEQ-sample windows of both batch frames, side by side.
    pieces = [h[:, b * _FRAME_W + _LEAD: b * _FRAME_W + _LEAD + OUT_SEQ] for b in range(BATCH)]
    out_val = jnp.concatenate(pieces, axis=1) if BATCH > 1 else pieces[0]
    o_ref[...] = out_val.astype(o_ref.dtype)


# ------------------------------ parameter setup -------------------------------
def _init_conv(key, cout, cin, k, scale=0.1):
    kw, kb = jax.random.split(key)
    w = scale * jax.random.normal(kw, (cout, cin, k), jnp.float32)
    b = scale * jax.random.normal(kb, (cout,), jnp.float32)
    return w, b


def init_generator_params(key):
    keys = jax.random.split(key, 16)
    params = {}

    # "upper" ConvTranspose1d(mel, mel, INIT_K): PyTorch weight layout (Cin, Cout, K).
    w_t = 0.1 * jax.random.normal(keys[0], (MEL_CHANNELS, MEL_CHANNELS, INIT_K), jnp.float32)
    b_t = 0.1 * jax.random.normal(keys[1], (MEL_CHANNELS,), jnp.float32)
    params["upper"] = (w_t, b_t)

    # TODO(synk): DilatedCausalConv1d assumed: num_layer0 causal convs, dilation 2**i, ReLU.
    layer0 = []
    for i in range(NUM_LAYER0):
        cin = MEL_CHANNELS if i == 0 else CH0
        layer0.append(_init_conv(keys[2 + i], CH0, cin, KERNEL0))
    params["layer0"] = layer0

    # TODO(synk): nResBlocks1d assumed: causal projection ch0->ch1 (+ReLU), then
    # num_reslayers blocks of  h = relu(conv(x, ch1->ch1//divisor));
    #                          x = relu(x + conv(h, ch1//divisor->ch1)).
    params["layer1_proj"] = _init_conv(keys[6], CH1, CH0, KERNEL1)
    mid = CH1 // DIVISOR
    blocks = []
    for i in range(NUM_RESLAYERS):
        w1, b1 = _init_conv(keys[7 + 2 * i], mid, CH1, KERNEL1)
        w2, b2 = _init_conv(keys[8 + 2 * i], CH1, mid, KERNEL1)
        blocks.append((w1, b1, w2, b2))
    params["layer1_blocks"] = blocks

    # layer2: CausalConv1d(ch1, fft_channels, kernel2) followed by the Sequential's nn.ReLU().
    params["layer2"] = _init_conv(keys[12], FFT_CHANNELS, CH1, KERNEL2)
    return params


# -------------------------- parameter slab packing ---------------------------
def _im2col_weight(w, transpose_conv=False):
    """Conv1d (Cout,Cin,K) or ConvTranspose1d (Cin,Cout,K) weight -> (Cout, K*Cin) matrix whose
    lane index is j*Cin + cin for tap j, matching the kernel's tap-stacking order."""
    if transpose_conv:
        w = jnp.transpose(w, (1, 2, 0))     # (Cout, K, Cin): [co, k, ci] = W[ci, co, k]
    else:
        w = jnp.transpose(w, (0, 2, 1))     # (Cout, K, Cin): [co, k, ci] = W[co, ci, k]
    return w.reshape(w.shape[0], -1).astype(jnp.float32)


def pack_generator_params(params):
    """Pack all 9 layers' weights + biases into one lane-dense (184, 128) f32 slab
    (one HBM->VMEM DMA instead of 18 tiny partially-masked ones)."""
    mats = []
    wt, bt = params["upper"]
    mats.append((_im2col_weight(wt, transpose_conv=True), bt))
    for (w, b) in params["layer0"]:
        mats.append((_im2col_weight(w), b))
    w, b = params["layer1_proj"]
    mats.append((_im2col_weight(w), b))
    for (w1, b1, w2, b2) in params["layer1_blocks"]:
        mats.append((_im2col_weight(w1), b1))
        mats.append((_im2col_weight(w2), b2))
    w, b = params["layer2"]
    mats.append((_im2col_weight(w), b))

    blocks = []
    for (wm, b), (cout, cin, shifts) in zip(mats, _LAYER_DEFS):
        assert wm.shape == (cout, len(shifts) * cin), (wm.shape, cout, cin, shifts)
        blk = jnp.zeros((cout, _SLAB_LANES), jnp.float32)
        blk = blk.at[:, :wm.shape[1]].set(wm)
        blk = blk.at[:, _BIAS_COL].set(b.astype(jnp.float32))
        blocks.append(blk)
    slab = jnp.concatenate(blocks, axis=0)
    assert slab.shape == (_SLAB_ROWS, _SLAB_LANES)
    return slab


# -------------------------------- forward pass --------------------------------
@jax.jit
def generator_forward(param_slab, x):
    """x: (BATCH, mel_channels, IN_SEQ) -> (BATCH, fft_channels, OUT_SEQ)."""
    assert x.shape == (BATCH, MEL_CHANNELS, IN_SEQ)
    assert param_slab.shape == (_SLAB_ROWS, _SLAB_LANES)
    vmem = pl.BlockSpec(memory_space=pltpu.MemorySpace.VMEM)     # whole array, VMEM-resident
    out = pl.pallas_call(
        _generator_kernel,
        out_shape=jax.ShapeDtypeStruct((FFT_CHANNELS, BATCH * OUT_SEQ), jnp.float32),
        in_specs=[vmem, vmem],
        out_specs=vmem,
        scratch_shapes=[pltpu.VMEM((MEL_CHANNELS, _TOTAL_W), jnp.float32)],
    )(x.astype(jnp.float32), param_slab)
    # (FFT, B*OUT) -> (B, FFT, OUT): cheap wrapper-side layout fixup of the lane-dense store.
    return out.reshape(FFT_CHANNELS, BATCH, OUT_SEQ).transpose(1, 0, 2)

# TODO(synk): ToWave() uses GriffinLim (iterative ISTFT phase recovery) — out of scope for a
# single Pallas kernel; only forward() is implemented here.


# ------------------------- pure-JAX reference (numerics) ----------------------
def _ref_causal_conv1d(h, w, b, dilation=1):
    cout, cin, k = w.shape
    t = h.shape[1]
    hp = jnp.pad(h, ((0, 0), ((k - 1) * dilation, 0)))
    out = jnp.zeros((cout, t), jnp.float32) + b[:, None]
    for j in range(k):
        out = out + jnp.dot(w[:, :, j], hp[:, j * dilation: j * dilation + t])
    return out


def _ref_conv_transpose1d(h, w, b):
    cin, cout, k = w.shape
    t = h.shape[1]
    tout = t + k - 1
    hp = jnp.pad(h, ((0, 0), (k - 1, k - 1)))
    out = jnp.zeros((cout, tout), jnp.float32) + b[:, None]
    for j in range(k):
        out = out + jnp.dot(w[:, :, j].T, hp[:, k - 1 - j: k - 1 - j + tout])
    return out


def generator_reference(params, x):
    """Layer-by-layer reference mirroring the (assumed) PyTorch topology."""
    outs = []
    for bidx in range(x.shape[0]):
        h = x[bidx].astype(jnp.float32)
        wt, bt = params["upper"]
        h = _ref_conv_transpose1d(h, wt, bt)
        for i, (w, b) in enumerate(params["layer0"]):
            h = jnp.maximum(_ref_causal_conv1d(h, w, b, dilation=2 ** i), 0.0)
        w, b = params["layer1_proj"]
        h = jnp.maximum(_ref_causal_conv1d(h, w, b), 0.0)
        for (w1, b1, w2, b2) in params["layer1_blocks"]:
            res = h
            hm = jnp.maximum(_ref_causal_conv1d(h, w1, b1), 0.0)
            h = jnp.maximum(res + _ref_causal_conv1d(hm, w2, b2), 0.0)
        w, b = params["layer2"]
        h = jnp.maximum(_ref_causal_conv1d(h, w, b), 0.0)
        outs.append(h)
    return jnp.stack(outs, axis=0)


if __name__ == "__main__":
    key = jax.random.PRNGKey(0)
    k_params, k_x = jax.random.split(key)
    params = init_generator_params(k_params)
    x = jax.random.normal(k_x, (BATCH, MEL_CHANNELS, IN_SEQ), jnp.float32)

    slab = pack_generator_params(params)
    out = jax.block_until_ready(generator_forward(slab, x))

    assert out.shape == (BATCH, FFT_CHANNELS, OUT_SEQ), out.shape
    assert out.dtype == jnp.float32
    assert bool(jnp.all(jnp.isfinite(out)))
    assert bool(jnp.all(out >= 0.0))                         # final ReLU

    ref = jax.jit(generator_reference)(params, x)
    max_err = float(jnp.max(jnp.abs(out - ref)))
    assert bool(jnp.allclose(out, ref, atol=2e-2, rtol=2e-2)), f"max abs err {max_err}"

    print("KERNEL_OK")
</pallas_src>

<mosaic_0001>
module attributes {stable_mosaic.version = 11 : i64} {
  func.func @_generator_kernel(%arg0: memref<2x8x16xf32, #tpu.memory_space<vmem>>, %arg1: memref<184x128xf32, #tpu.memory_space<vmem>>, %arg2: memref<16x48xf32, #tpu.memory_space<vmem>>, %arg3: memref<8x128xf32, #tpu.memory_space<vmem>>) attributes {dimension_semantics = [], scalar_prefetch = 0 : i64, scratch_operands = 1 : i64, tpu.core_type = #tpu.core_type<tc>} {
    %cst = arith.constant 0.000000e+00 : f32
    %0 = vector.broadcast %cst : f32 to vector<8x128xf32>
    %c0 = arith.constant 0 : index
    %c0_0 = arith.constant 0 : index
    %1 = vector.load %arg3[%c0, %c0_0] : memref<8x128xf32, #tpu.memory_space<vmem>>, vector<8x128xf32>
    tpu.vector_store %arg3[%c0, %c0_0], %0 {strides = array<i32>} : memref<8x128xf32, #tpu.memory_space<vmem>>, vector<8x128xf32>,
    %c0_1 = arith.constant 0 : index
    %c0_2 = arith.constant 0 : index
    %c0_3 = arith.constant 0 : index
    %2 = vector.load %arg0[%c0_1, %c0_2, %c0_3] : memref<2x8x16xf32, #tpu.memory_space<vmem>>, vector<1x8x16xf32>
    %3 = vector.shape_cast %2 : vector<1x8x16xf32> to vector<8x16xf32>
    %c0_4 = arith.constant 0 : index
    %c26 = arith.constant 26 : index
    %4 = vector.load %arg3[%c0_4, %c26] : memref<8x128xf32, #tpu.memory_space<vmem>>, vector<8x16xf32>
    tpu.vector_store %arg3[%c0_4, %c26], %3 {strides = array<i32>} : memref<8x128xf32, #tpu.memory_space<vmem>>, vector<8x16xf32>,
    %c1 = arith.constant 1 : index
    %c0_5 = arith.constant 0 : index
    %c0_6 = arith.constant 0 : index
    %5 = vector.load %arg0[%c1, %c0_5, %c0_6] : memref<2x8x16xf32, #tpu.memory_space<vmem>>, vector<1x8x16xf32>
    %6 = vector.shape_cast %5 : vector<1x8x16xf32> to vector<8x16xf32>
    %c0_7 = arith.constant 0 : index
    %c90 = arith.constant 90 : index
    %7 = vector.load %arg3[%c0_7, %c90] : memref<8x128xf32, #tpu.memory_space<vmem>>, vector<8x16xf32>
    tpu.vector_store %arg3[%c0_7, %c90], %6 {strides = array<i32>} : memref<8x128xf32, #tpu.memory_space<vmem>>, vector<8x16xf32>,
    %c0_8 = arith.constant 0 : index
    %c0_9 = arith.constant 0 : index
    %8 = vector.load %arg3[%c0_8, %c0_9] : memref<8x128xf32, #tpu.memory_space<vmem>>, vector<8x128xf32>
    %9 = tpu.iota {dimensions = array<i32: 1>} : vector<1x128xi32>
    %c64_i32 = arith.constant 64 : i32
    %c0_i32 = arith.constant 0 : i32
    %10 = arith.cmpi eq, %c64_i32, %c0_i32 : i32
    %c1_i32 = arith.constant 1 : i32
    %11 = arith.select %10, %c1_i32, %c64_i32 : i32
    %12 = vector.broadcast %11 : i32 to vector<1x128xi32>
    %13 = arith.remsi %9, %12 : vector<1x128xi32>
    %c0_i32_10 = arith.constant 0 : i32
    %14 = vector.broadcast %c0_i32_10 : i32 to vector<1x128xi32>
    %15 = arith.cmpi ne, %13, %14 : vector<1x128xi32>
    %c0_i32_11 = arith.constant 0 : i32
    %16 = vector.broadcast %c0_i32_11 : i32 to vector<1x128xi32>
    %17 = arith.cmpi slt, %13, %16 : vector<1x128xi32>
    %c0_i32_12 = arith.constant 0 : i32
    %18 = arith.cmpi slt, %11, %c0_i32_12 : i32
    %19 = vector.broadcast %18 : i1 to vector<1x128xi1>
    %20 = vector.broadcast %19 : vector<1x128xi1> to vector<1x128xi1>
    %21 = arith.xori %17, %20 : vector<1x128xi1>
    %22 = arith.andi %21, %15 : vector<1x128xi1>
    %23 = vector.broadcast %11 : i32 to vector<1x128xi32>
    %24 = arith.addi %13, %23 : vector<1x128xi32>
    %25 = arith.select %22, %24, %13 : vector<1x128xi1>, vector<1x128xi32>
    %c26_i32 = arith.constant 26 : i32
    %26 = vector.broadcast %c26_i32 : i32 to vector<1x128xi32>
    %27 = arith.cmpi sge, %25, %26 : vector<1x128xi32>
    %c0_13 = arith.constant 0 : index
    %c0_14 = arith.constant 0 : index
    %28 = vector.load %arg1[%c0_13, %c0_14] : memref<184x128xf32, #tpu.memory_space<vmem>>, vector<8x72xf32>
    %c0_15 = arith.constant 0 : index
    %c127 = arith.constant 127 : index
    %29 = vector.load %arg1[%c0_15, %c127] : memref<184x128xf32, #tpu.memory_space<vmem>>, vector<8x1xf32>
    %c1_i32_16 = arith.constant 1 : i32
    %30 = tpu.dynamic_rotate %8 by %c1_i32_16 dim 1 : vector<8x128xf32>, i32 -> vector<8x128xf32>
    %c2_i32 = arith.constant 2 : i32
    %31 = tpu.dynamic_rotate %8 by %c2_i32 dim 1 : vector<8x128xf32>, i32 -> vector<8x128xf32>
    %c3_i32 = arith.constant 3 : i32
    %32 = tpu.dynamic_rotate %8 by %c3_i32 dim 1 : vector<8x128xf32>, i32 -> vector<8x128xf32>
    %c4_i32 = arith.constant 4 : i32
    %33 = tpu.dynamic_rotate %8 by %c4_i32 dim 1 : vector<8x128xf32>, i32 -> vector<8x128xf32>
    %c5_i32 = arith.constant 5 : i32
    %34 = tpu.dynamic_rotate %8 by %c5_i32 dim 1 : vector<8x128xf32>, i32 -> vector<8x128xf32>
    %c6_i32 = arith.constant 6 : i32
    %35 = tpu.dynamic_rotate %8 by %c6_i32 dim 1 : vector<8x128xf32>, i32 -> vector<8x128xf32>
    %c7_i32 = arith.constant 7 : i32
    %36 = tpu.dynamic_rotate %8 by %c7_i32 dim 1 : vector<8x128xf32>, i32 -> vector<8x128xf32>
    %c8_i32 = arith.constant 8 : i32
    %37 = tpu.dynamic_rotate %8 by %c8_i32 dim 1 : vector<8x128xf32>, i32 -> vector<8x128xf32>
    %38 = tpu.concatenate %8, %30, %31, %32, %33, %34, %35, %36, %37 in 0 : vector<8x128xf32>, vector<8x128xf32>, vector<8x128xf32>, vector<8x128xf32>, vector<8x128xf32>, vector<8x128xf32>, vector<8x128xf32>, vector<8x128xf32>, vector<8x128xf32> -> vector<72x128xf32>
    %cst_17 = arith.constant dense<0.000000e+00> : vector<8x128xf32>
    %39 = tpu.matmul %28, %38, %cst_17 {dimension_numbers = #tpu.dot_dimension_numbers<[1], [0], [0], [1], [0, 0, 1, 1], [], []>} : vector<8x72xf32>, vector<72x128xf32>, vector<8x128xf32> -> vector<8x128xf32>
    %40 = vector.broadcast %29 : vector<8x1xf32> to vector<8x128xf32>
    %41 = arith.addf %39, %40 : vector<8x128xf32>
    %cst_18 = arith.constant 0.000000e+00 : f32
    %42 = vector.shape_cast %27 : vector<1x128xi1> to vector<1x128xi1>
    %43 = vector.broadcast %42 : vector<1x128xi1> to vector<8x128xi1>
    %44 = vector.broadcast %cst_18 : f32 to vector<8x128xf32>
    %45 = arith.select %43, %41, %44 : vector<8x128xi1>, vector<8x128xf32>
    %c8 = arith.constant 8 : index
    %c0_19 = arith.constant 0 : index
    %46 = vector.load %arg1[%c8, %c0_19] : memref<184x128xf32, #tpu.memory_space<vmem>>, vector<16x24xf32>
    %c8_20 = arith.constant 8 : index
    %c127_21 = arith.constant 127 : index
    %47 = vector.load %arg1[%c8_20, %c127_21] : memref<184x128xf32, #tpu.memory_space<vmem>>, vector<16x1xf32>
    %c2_i32_22 = arith.constant 2 : i32
    %48 = tpu.dynamic_rotate %45 by %c2_i32_22 dim 1 : vector<8x128xf32>, i32 -> vector<8x128xf32>
    %c1_i32_23 = arith.constant 1 : i32
    %49 = tpu.dynamic_rotate %45 by %c1_i32_23 dim 1 : vector<8x128xf32>, i32 -> vector<8x128xf32>
    %50 = tpu.concatenate %48, %49, %45 in 0 : vector<8x128xf32>, vector<8x128xf32>, vector<8x128xf32> -> vector<24x128xf32>
    %cst_24 = arith.constant dense<0.000000e+00> : vector<16x128xf32>
    %51 = tpu.matmul %46, %50, %cst_24 {dimension_numbers = #tpu.dot_dimension_numbers<[1], [0], [0], [1], [0, 0, 1, 1], [], []>} : vector<16x24xf32>, vector<24x128xf32>, vector<16x128xf32> -> vector<16x128xf32>
    %52 = vector.broadcast %47 : vector<16x1xf32> to vector<16x128xf32>
    %53 = arith.addf %51, %52 : vector<16x128xf32>
    %cst_25 = arith.constant 0.000000e+00 : f32
    %54 = vector.broadcast %cst_25 : f32 to vector<16x128xf32>
    %55 = arith.maximumf %53, %54 : vector<16x128xf32>
    %cst_26 = arith.constant 0.000000e+00 : f32
    %56 = vector.shape_cast %27 : vector<1x128xi1> to vector<1x128xi1>
    %57 = vector.broadcast %56 : vector<1x128xi1> to vector<16x128xi1>
    %58 = vector.broadcast %cst_26 : f32 to vector<16x128xf32>
    %59 = arith.select %57, %55, %58 : vector<16x128xi1>, vector<16x128xf32>
    %c24 = arith.constant 24 : index
    %c0_27 = arith.constant 0 : index
    %60 = vector.load %arg1[%c24, %c0_27] : memref<184x128xf32, #tpu.memory_space<vmem>>, vector<16x48xf32>
    %c24_28 = arith.constant 24 : index
    %c127_29 = arith.constant 127 : index
    %61 = vector.load %arg1[%c24_28, %c127_29] : memref<184x128xf32, #tpu.memory_space<vmem>>, vector<16x1xf32>
    %c4_i32_30 = arith.constant 4 : i32
    %62 = tpu.dynamic_rotate %59 by %c4_i32_30 dim 1 : vector<16x128xf32>, i32 -> vector<16x128xf32>
    %c2_i32_31 = arith.constant 2 : i32
    %63 = tpu.dynamic_rotate %59 by %c2_i32_31 dim 1 : vector<16x128xf32>, i32 -> vector<16x128xf32>
    %64 = tpu.concatenate %62, %63, %59 in 0 : vector<16x128xf32>, vector<16x128xf32>, vector<16x128xf32> -> vector<48x128xf32>
    %cst_32 = arith.constant dense<0.000000e+00> : vector<16x128xf32>
    %65 = tpu.matmul %60, %64, %cst_32 {dimension_numbers = #tpu.dot_dimension_numbers<[1], [0], [0], [1], [0, 0, 1, 1], [], []>} : vector<16x48xf32>, vector<48x128xf32>, vector<16x128xf32> -> vector<16x128xf32>
    %66 = vector.broadcast %61 : vector<16x1xf32> to vector<16x128xf32>
    %67 = arith.addf %65, %66 : vector<16x128xf32>
    %cst_33 = arith.constant 0.000000e+00 : f32
    %68 = vector.broadcast %cst_33 : f32 to vector<16x128xf32>
    %69 = arith.maximumf %67, %68 : vector<16x128xf32>
    %cst_34 = arith.constant 0.000000e+00 : f32
    %70 = vector.shape_cast %27 : vector<1x128xi1> to vector<1x128xi1>
    %71 = vector.broadcast %70 : vector<1x128xi1> to vector<16x128xi1>
    %72 = vector.broadcast %cst_34 : f32 to vector<16x128xf32>
    %73 = arith.select %71, %69, %72 : vector<16x128xi1>, vector<16x128xf32>
    %c40 = arith.constant 40 : index
    %c0_35 = arith.constant 0 : index
    %74 = vector.load %arg1[%c40, %c0_35] : memref<184x128xf32, #tpu.memory_space<vmem>>, vector<32x48xf32>
    %c40_36 = arith.constant 40 : index
    %c127_37 = arith.constant 127 : index
    %75 = vector.load %arg1[%c40_36, %c127_37] : memref<184x128xf32, #tpu.memory_space<vmem>>, vector<32x1xf32>
    %c2_i32_38 = arith.constant 2 : i32
    %76 = tpu.dynamic_rotate %73 by %c2_i32_38 dim 1 : vector<16x128xf32>, i32 -> vector<16x128xf32>
    %c1_i32_39 = arith.constant 1 : i32
    %77 = tpu.dynamic_rotate %73 by %c1_i32_39 dim 1 : vector<16x128xf32>, i32 -> vector<16x128xf32>
    %78 = tpu.concatenate %76, %77, %73 in 0 : vector<16x128xf32>, vector<16x128xf32>, vector<16x128xf32> -> vector<48x128xf32>
    %cst_40 = arith.constant dense<0.000000e+00> : vector<32x128xf32>
    %79 = tpu.matmul %74, %78, %cst_40 {dimension_numbers = #tpu.dot_dimension_numbers<[1], [0], [0], [1], [0, 0, 1, 1], [], []>} : vector<32x48xf32>, vector<48x128xf32>, vector<32x128xf32> -> vector<32x128xf32>
    %80 = vector.broadcast %75 : vector<32x1xf32> to vector<32x128xf32>
    %81 = arith.addf %79, %80 : vector<32x128xf32>
    %cst_41 = arith.constant 0.000000e+00 : f32
    %82 = vector.broadcast %cst_41 : f32 to vector<32x128xf32>
    %83 = arith.maximumf %81, %82 : vector<32x128xf32>
    %cst_42 = arith.constant 0.000000e+00 : f32
    %84 = vector.shape_cast %27 : vector<1x128xi1> to vector<1x128xi1>
    %85 = vector.broadcast %84 : vector<1x128xi1> to vector<32x128xi1>
    %86 = vector.broadcast %cst_42 : f32 to vector<32x128xf32>
    %87 = arith.select %85, %83, %86 : vector<32x128xi1>, vector<32x128xf32>
    %c72 = arith.constant 72 : index
    %c0_43 = arith.constant 0 : index
    %88 = vector.load %arg1[%c72, %c0_43] : memref<184x128xf32, #tpu.memory_space<vmem>>, vector<16x96xf32>
    %c72_44 = arith.constant 72 : index
    %c127_45 = arith.constant 127 : index
    %89 = vector.load %arg1[%c72_44, %c127_45] : memref<184x128xf32, #tpu.memory_space<vmem>>, vector<16x1xf32>
    %c2_i32_46 = arith.constant 2 : i32
    %90 = tpu.dynamic_rotate %87 by %c2_i32_46 dim 1 : vector<32x128xf32>, i32 -> vector<32x128xf32>
    %c1_i32_47 = arith.constant 1 : i32
    %91 = tpu.dynamic_rotate %87 by %c1_i32_47 dim 1 : vector<32x128xf32>, i32 -> vector<32x128xf32>
    %92 = tpu.concatenate %90, %91, %87 in 0 : vector<32x128xf32>, vector<32x128xf32>, vector<32x128xf32> -> vector<96x128xf32>
    %cst_48 = arith.constant dense<0.000000e+00> : vector<16x128xf32>
    %93 = tpu.matmul %88, %92, %cst_48 {dimension_numbers = #tpu.dot_dimension_numbers<[1], [0], [0], [1], [0, 0, 1, 1], [], []>} : vector<16x96xf32>, vector<96x128xf32>, vector<16x128xf32> -> vector<16x128xf32>
    %94 = vector.broadcast %89 : vector<16x1xf32> to vector<16x128xf32>
    %95 = arith.addf %93, %94 : vector<16x128xf32>
    %cst_49 = arith.constant 0.000000e+00 : f32
    %96 = vector.broadcast %cst_49 : f32 to vector<16x128xf32>
    %97 = arith.maximumf %95, %96 : vector<16x128xf32>
    %cst_50 = arith.constant 0.000000e+00 : f32
    %98 = vector.shape_cast %27 : vector<1x128xi1> to vector<1x128xi1>
    %99 = vector.broadcast %98 : vector<1x128xi1> to vector<16x128xi1>
    %100 = vector.broadcast %cst_50 : f32 to vector<16x128xf32>
    %101 = arith.select %99, %97, %100 : vector<16x128xi1>, vector<16x128xf32>
    %c88 = arith.constant 88 : index
    %c0_51 = arith.constant 0 : index
    %102 = vector.load %arg1[%c88, %c0_51] : memref<184x128xf32, #tpu.memory_space<vmem>>, vector<32x48xf32>
    %c88_52 = arith.constant 88 : index
    %c127_53 = arith.constant 127 : index
    %103 = vector.load %arg1[%c88_52, %c127_53] : memref<184x128xf32, #tpu.memory_space<vmem>>, vector<32x1xf32>
    %c2_i32_54 = arith.constant 2 : i32
    %104 = tpu.dynamic_rotate %101 by %c2_i32_54 dim 1 : vector<16x128xf32>, i32 -> vector<16x128xf32>
    %c1_i32_55 = arith.constant 1 : i32
    %105 = tpu.dynamic_rotate %101 by %c1_i32_55 dim 1 : vector<16x128xf32>, i32 -> vector<16x128xf32>
    %106 = tpu.concatenate %104, %105, %101 in 0 : vector<16x128xf32>, vector<16x128xf32>, vector<16x128xf32> -> vector<48x128xf32>
    %cst_56 = arith.constant dense<0.000000e+00> : vector<32x128xf32>
    %107 = tpu.matmul %102, %106, %cst_56 {dimension_numbers = #tpu.dot_dimension_numbers<[1], [0], [0], [1], [0, 0, 1, 1], [], []>} : vector<32x48xf32>, vector<48x128xf32>, vector<32x128xf32> -> vector<32x128xf32>
    %108 = vector.broadcast %103 : vector<32x1xf32> to vector<32x128xf32>
    %109 = arith.addf %107, %108 : vector<32x128xf32>
    %110 = arith.addf %109, %87 : vector<32x128xf32>
    %cst_57 = arith.constant 0.000000e+00 : f32
    %111 = vector.broadcast %cst_57 : f32 to vector<32x128xf32>
    %112 = arith.maximumf %110, %111 : vector<32x128xf32>
    %cst_58 = arith.constant 0.000000e+00 : f32
    %113 = vector.shape_cast %27 : vector<1x128xi1> to vector<1x128xi1>
    %114 = vector.broadcast %113 : vector<1x128xi1> to vector<32x128xi1>
    %115 = vector.broadcast %cst_58 : f32 to vector<32x128xf32>
    %116 = arith.select %114, %112, %115 : vector<32x128xi1>, vector<32x128xf32>
    %c120 = arith.constant 120 : index
    %c0_59 = arith.constant 0 : index
    %117 = vector.load %arg1[%c120, %c0_59] : memref<184x128xf32, #tpu.memory_space<vmem>>, vector<16x96xf32>
    %c120_60 = arith.constant 120 : index
    %c127_61 = arith.constant 127 : index
    %118 = vector.load %arg1[%c120_60, %c127_61] : memref<184x128xf32, #tpu.memory_space<vmem>>, vector<16x1xf32>
    %c2_i32_62 = arith.constant 2 : i32
    %119 = tpu.dynamic_rotate %116 by %c2_i32_62 dim 1 : vector<32x128xf32>, i32 -> vector<32x128xf32>
    %c1_i32_63 = arith.constant 1 : i32
    %120 = tpu.dynamic_rotate %116 by %c1_i32_63 dim 1 : vector<32x128xf32>, i32 -> vector<32x128xf32>
    %121 = tpu.concatenate %119, %120, %116 in 0 : vector<32x128xf32>, vector<32x128xf32>, vector<32x128xf32> -> vector<96x128xf32>
    %cst_64 = arith.constant dense<0.000000e+00> : vector<16x128xf32>
    %122 = tpu.matmul %117, %121, %cst_64 {dimension_numbers = #tpu.dot_dimension_numbers<[1], [0], [0], [1], [0, 0, 1, 1], [], []>} : vector<16x96xf32>, vector<96x128xf32>, vector<16x128xf32> -> vector<16x128xf32>
    %123 = vector.broadcast %118 : vector<16x1xf32> to vector<16x128xf32>
    %124 = arith.addf %122, %123 : vector<16x128xf32>
    %cst_65 = arith.constant 0.000000e+00 : f32
    %125 = vector.broadcast %cst_65 : f32 to vector<16x128xf32>
    %126 = arith.maximumf %124, %125 : vector<16x128xf32>
    %cst_66 = arith.constant 0.000000e+00 : f32
    %127 = vector.shape_cast %27 : vector<1x128xi1> to vector<1x128xi1>
    %128 = vector.broadcast %127 : vector<1x128xi1> to vector<16x128xi1>
    %129 = vector.broadcast %cst_66 : f32 to vector<16x128xf32>
    %130 = arith.select %128, %126, %129 : vector<16x128xi1>, vector<16x128xf32>
    %c136 = arith.constant 136 : index
    %c0_67 = arith.constant 0 : index
    %131 = vector.load %arg1[%c136, %c0_67] : memref<184x128xf32, #tpu.memory_space<vmem>>, vector<32x48xf32>
    %c136_68 = arith.constant 136 : index
    %c127_69 = arith.constant 127 : index
    %132 = vector.load %arg1[%c136_68, %c127_69] : memref<184x128xf32, #tpu.memory_space<vmem>>, vector<32x1xf32>
    %c2_i32_70 = arith.constant 2 : i32
    %133 = tpu.dynamic_rotate %130 by %c2_i32_70 dim 1 : vector<16x128xf32>, i32 -> vector<16x128xf32>
    %c1_i32_71 = arith.constant 1 : i32
    %134 = tpu.dynamic_rotate %130 by %c1_i32_71 dim 1 : vector<16x128xf32>, i32 -> vector<16x128xf32>
    %135 = tpu.concatenate %133, %134, %130 in 0 : vector<16x128xf32>, vector<16x128xf32>, vector<16x128xf32> -> vector<48x128xf32>
    %cst_72 = arith.constant dense<0.000000e+00> : vector<32x128xf32>
    %136 = tpu.matmul %131, %135, %cst_72 {dimension_numbers = #tpu.dot_dimension_numbers<[1], [0], [0], [1], [0, 0, 1, 1], [], []>} : vector<32x48xf32>, vector<48x128xf32>, vector<32x128xf32> -> vector<32x128xf32>
    %137 = vector.broadcast %132 : vector<32x1xf32> to vector<32x128xf32>
    %138 = arith.addf %136, %137 : vector<32x128xf32>
    %139 = arith.addf %138, %116 : vector<32x128xf32>
    %cst_73 = arith.constant 0.000000e+00 : f32
    %140 = vector.broadcast %cst_73 : f32 to vector<32x128xf32>
    %141 = arith.maximumf %139, %140 : vector<32x128xf32>
    %cst_74 = arith.constant 0.000000e+00 : f32
    %142 = vector.shape_cast %27 : vector<1x128xi1> to vector<1x128xi1>
    %143 = vector.broadcast %142 : vector<1x128xi1> to vector<32x128xi1>
    %144 = vector.broadcast %cst_74 : f32 to vector<32x128xf32>
    %145 = arith.select %143, %141, %144 : vector<32x128xi1>, vector<32x128xf32>
    %c168 = arith.constant 168 : index
    %c0_75 = arith.constant 0 : index
    %146 = vector.load %arg1[%c168, %c0_75] : memref<184x128xf32, #tpu.memory_space<vmem>>, vector<16x96xf32>
    %c168_76 = arith.constant 168 : index
    %c127_77 = arith.constant 127 : index
    %147 = vector.load %arg1[%c168_76, %c127_77] : memref<184x128xf32, #tpu.memory_space<vmem>>, vector<16x1xf32>
    %c2_i32_78 = arith.constant 2 : i32
    %148 = tpu.dynamic_rotate %145 by %c2_i32_78 dim 1 : vector<32x128xf32>, i32 -> vector<32x128xf32>
    %c1_i32_79 = arith.constant 1 : i32
    %149 = tpu.dynamic_rotate %145 by %c1_i32_79 dim 1 : vector<32x128xf32>, i32 -> vector<32x128xf32>
    %150 = tpu.concatenate %148, %149, %145 in 0 : vector<32x128xf32>, vector<32x128xf32>, vector<32x128xf32> -> vector<96x128xf32>
    %cst_80 = arith.constant dense<0.000000e+00> : vector<16x128xf32>
    %151 = tpu.matmul %146, %150, %cst_80 {dimension_numbers = #tpu.dot_dimension_numbers<[1], [0], [0], [1], [0, 0, 1, 1], [], []>} : vector<16x96xf32>, vector<96x128xf32>, vector<16x128xf32> -> vector<16x128xf32>
    %152 = vector.broadcast %147 : vector<16x1xf32> to vector<16x128xf32>
    %153 = arith.addf %151, %152 : vector<16x128xf32>
    %cst_81 = arith.constant 0.000000e+00 : f32
    %154 = vector.broadcast %cst_81 : f32 to vector<16x128xf32>
    %155 = arith.maximumf %153, %154 : vector<16x128xf32>
    %156 = vector.extract_strided_slice %155 {offsets = [0, 26], sizes = [16, 24], strides = [1, 1]} : vector<16x128xf32> to vector<16x24xf32>
    %157 = vector.extract_strided_slice %155 {offsets = [0, 90], sizes = [16, 24], strides = [1, 1]} : vector<16x128xf32> to vector<16x24xf32>
    %158 = tpu.concatenate %156, %157 in 1 : vector<16x24xf32>, vector<16x24xf32> -> vector<16x48xf32>
    %c0_82 = arith.constant 0 : index
    %c0_83 = arith.constant 0 : index
    %159 = vector.load %arg2[%c0_82, %c0_83] : memref<16x48xf32, #tpu.memory_space<vmem>>, vector<16x48xf32>
    tpu.vector_store %arg2[%c0_82, %c0_83], %158 {strides = array<i32>} : memref<16x48xf32, #tpu.memory_space<vmem>>, vector<16x48xf32>,
    return
  }
}

</mosaic_0001>

<llo_original>
// kernel: generator_forward.1
$region0: #{generator_forward.1}
  #allocation0 [shape = 'u32[]', space=smem, size = 0x4, offset = 0x4, fixed_abs, tag = 'smem constant byte address 0x4 - core index']
  #allocation1 [shape = 'u32[144,128]{1,0:T(1,128)}', space=vmem, size = 0x12000, scoped, tag = 'internal scratch']
  #allocation2 [shape = 'f32[8,128]{1,0:T(8,128)}', space=vmem, size = 0x1000, scoped, tag = 'scratch operand']
  %s0 = inlined_call_operand.hbm [shape: f32[2,8,16], index: 0, kind: input, shape index: {}]
  %s1 = inlined_call_operand.hbm [shape: f32[184,128], index: 1, kind: input, shape index: {}]
  %s2 = inlined_call_operand.vmem [shape: f32[16,48], index: 2, kind: output, shape index: {}]
  %s3 = sld [smem:[#allocation0]]
  $region26: #{generator_forward.1} parent=0
    _
  %s5 = ssub.s32 1, %s3
  %s6 = scalar_select 0, %s5, %s3
  $region1: #{generator_forward.1} parent=0
    #allocation3 [shape = 'u8[8192]{0}', space=vmem, size = 0x2000, scoped, tag = 'input window, operand 0, single buffered']
    #allocation4 [shape = 's32[1]{0}', space=sflag, size = 0x4, scoped, tag = 'scoped memory for generator_forward.1']
    #allocation5 [shape = 'u8[94208]{0}', space=vmem, size = 0x17000, scoped, tag = 'input window, operand 1, single buffered']
    #allocation6 [shape = 's32[1]{0}', space=sflag, size = 0x4, scoped, tag = 'scoped memory for generator_forward.1']
    %7 = vsyncpa [#allocation4], 0
    %8 = vsyncpa [#allocation6], 0
    // Predicated region
    $region2: #{generator_forward.1} parent=1 // pred_check
      _
    $region3: #{generator_forward.1} parent=1 // pred_check_branch
      %10 = sbr.rel (0) target = $region5
    $region4: #{generator_forward.1} parent=1 // pred_region
      %s12 = ssub.s32 256, 256
      %13 = vsyncadd [#allocation4], %s12
      %s14 = sshll.u32 [#allocation3], 4
      %s15 = int_to_ptr.vmem [resolvable:$true] %s14
      %20 = dma.hbm_to_vmem [thread:$0]  %s0, 256, %s15, [#allocation4], 128, 128, 8
    $region5: #{generator_forward.1} parent=1 // pred_fallthru
      _
    // Predicated region
    $region6: #{generator_forward.1} parent=1 // pred_check
      _
    $region7: #{generator_forward.1} parent=1 // pred_check_branch
      %22 = sbr.rel (0) target = $region9
    $region8: #{generator_forward.1} parent=1 // pred_region
      %s24 = ssub.s32 2944, 2944
      %25 = vsyncadd [#allocation6], %s24
      %s26 = sshll.u32 [#allocation5], 4
      %s27 = int_to_ptr.vmem [resolvable:$true] %s26
      %32 = dma.hbm_to_vmem [thread:$0]  %s1, 2944, %s27, [#allocation6], 128, 128, 8
    $region9: #{generator_forward.1} parent=1 // pred_fallthru
      _
    // Predicated region
    $region10: #{generator_forward.1} parent=1 // pred_check
      _
    $region11: #{generator_forward.1} parent=1 // pred_check_branch
      %34 = sbr.rel (0) target = $region13
    $region12: #{generator_forward.1} parent=1 // pred_region
      %35 = dma.done [#allocation4], 256
    $region13: #{generator_forward.1} parent=1 // pred_fallthru
      _
    // Predicated region
    $region14: #{generator_forward.1} parent=1 // pred_check
      _
    $region15: #{generator_forward.1} parent=1 // pred_check_branch
      %37 = sbr.rel (0) target = $region17
    $region16: #{generator_forward.1} parent=1 // pred_region
      %38 = dma.done [#allocation6], 2944
    $region17: #{generator_forward.1} parent=1 // pred_fallthru
      _
    %39 = vst [vmem:[#allocation2] sm:$0xff] 0.0
    %v40 = vld [vmem:[#allocation3] sm:$0xff]
    %42 = vrot.lane.b32.xlu0 %v40, 26
    %v43 = vpop.permute.xlu0 %42
    %vm45 = vcmask 343248
    %46 = vst.msk [vmem:[#allocation2] sm:$0xff] %vm45, %v43
    %s47 = scalar_lea.vmem [#allocation3], 8
    %v48 = vld [vmem:[%s47] sm:$0xff]
    %50 = vrot.lane.b32.xlu0 %v48, 90
    %v51 = vpop.permute.xlu0 %50
    %vm53 = vcmask 868048
    %54 = vst.msk [vmem:[#allocation2] sm:$0xff] %vm53, %v51
    %v55 = vld [vmem:[#allocation2] sm:$0xff]
    %v56 = vlaneseq
    %v57 = vand.u32 %v56, 127
    %vm58 = vcmp.lt.s32.totalorder %v57, 0
    %v59 = vsub.s32 0, %v57
    %v60 = vsel %vm58, %v59, %v57
    %v61 = vshrl.u32 %v60, 6
    %v62 = vand.u32 %v60, 63
    %v63 = vsub.s32 0, %v62
    %v64 = vsel %vm58, %v63, %v62
    %vm65 = vcmp.ne.s32.totalorder %v64, 0
    %vm66 = vcmp.lt.s32.totalorder %v64, 0
    %vm67 = vmand %vm66, %vm65
    %v68 = vadd.s32 %v64, 64
    %v69 = vsel %vm67, %v68, %v64
    %vm70 = vcmp.ge.s32.totalorder %v69, 26
    %v71 = vld [vmem:[#allocation5] sm:$0xff]
    %72 = vrot.lane.b32.xlu0 %v55, 1
    %v73 = vpop.permute.xlu0 %72
    %74 = vrot.lane.b32.xlu0 %v55, 2
    %v75 = vpop.permute.xlu0 %74
    %76 = vrot.lane.b32.xlu0 %v55, 3
    %v77 = vpop.permute.xlu0 %76
    %78 = vrot.lane.b32.xlu0 %v55, 4
    %v79 = vpop.permute.xlu0 %78
    %80 = vrot.lane.b32.xlu0 %v55, 5
    %v81 = vpop.permute.xlu0 %80
    %82 = vrot.lane.b32.xlu0 %v55, 6
    %v83 = vpop.permute.xlu0 %82
    %84 = vrot.lane.b32.xlu0 %v55, 7
    %v85 = vpop.permute.xlu0 %84
    %86 = vrot.lane.b32.xlu0 %v55, 8
    %v87 = vpop.permute.xlu0 %86
    %89 = vset.pattern.permute.xlu0 127
    %90 = vperm.xlu0 %89, %v71
    %v91 = vpop.permute.xlu0 %90
    %vm93 = vcmask 588800
    %v94 = vsel %vm93, %v71, 0
    %96 = vmatprep.subr.mxu0 0.0
    %97 = vmatpush1.msra.mxu0 %v55
    %98 = vmatprep.subr.mxu0 0.0
    %99 = vmatpush1.msra.mxu0 %v73
    %100 = vmatprep.subr.mxu0 0.0
    %101 = vmatpush1.msra.mxu0 %v75
    %102 = vmatprep.subr.mxu0 0.0
    %103 = vmatpush1.msra.mxu0 %v77
    %104 = vmatprep.subr.mxu0 0.0
    %105 = vmatpush1.msra.mxu0 %v79
    %106 = vmatprep.subr.mxu0 0.0
    %107 = vmatpush1.msra.mxu0 %v81
    %108 = vmatprep.subr.mxu0 0.0
    %109 = vmatpush1.msra.mxu0 %v83
    %110 = vmatprep.subr.mxu0 0.0
    %111 = vmatpush1.msra.mxu0 %v85
    %112 = vmatprep.subr.mxu0 0.0
    %113 = vmatpush1.msra.mxu0 %v87
    %114 = vmatprep.subr.mxu0 0.0
    %115 = vmatpush1.msra.mxu0 0.0
    %116 = vmatprep.subr.mxu0 0.0
    %117 = vmatpush1.msra.mxu0 0.0
    %118 = vmatprep.subr.mxu0 0.0
    %119 = vmatpush1.msra.mxu0 0.0
    %120 = vmatprep.subr.mxu0 0.0
    %121 = vmatpush1.msra.mxu0 0.0
    %122 = vmatprep.subr.mxu0 0.0
    %123 = vmatpush1.msra.mxu0 0.0
    %124 = vmatprep.subr.mxu0 0.0
    %125 = vmatpush1.msra.mxu0 0.0
    %126 = vmatprep.subr.mxu0 0.0
    %127 = vmatpush1.msra.mxu0 0.0
    %128 = vmatprep.subr.mxu0 0.0
    %129 = vmatpush1.msra.mxu0 0.0
    %130 = vmatprep.subr.mxu0 0.0
    %131 = vmatpush1.msra.mxu0 0.0
    %132 = vmatprep.subr.mxu0 0.0
    %133 = vmatpush1.msra.mxu0 0.0
    %134 = vmatprep.subr.mxu0 0.0
    %135 = vmatpush1.msra.mxu0 0.0
    %136 = vmatprep.subr.mxu0 0.0
    %137 = vmatpush1.msra.mxu0 0.0
    %138 = vmatprep.subr.mxu0 0.0
    %139 = vmatpush1.msra.mxu0 0.0
    %140 = vmatprep.subr.mxu0 0.0
    %141 = vmatpush1.msra.mxu0 0.0
    %142 = vmatprep.subr.mxu0 0.0
    %143 = vmatpush1.msra.mxu0 0.0
    %144 = vmatprep.subr.mxu0 0.0
    %145 = vmatpush1.msra.mxu0 0.0
    %146 = vmatprep.subr.mxu0 0.0
    %147 = vmatpush1.msra.mxu0 0.0
    %148 = vmatprep.subr.mxu0 0.0
    %149 = vmatpush1.msra.mxu0 0.0
    %150 = vmatprep.subr.mxu0 0.0
    %151 = vmatpush1.msra.mxu0 0.0
    %152 = vmatprep.subr.mxu0 0.0
    %153 = vmatpush1.msra.mxu0 0.0
    %154 = vmatprep.subr.mxu0 0.0
    %155 = vmatpush1.msra.mxu0 0.0
    %156 = vmatprep.subr.mxu0 0.0
    %157 = vmatpush1.msra.mxu0 0.0
    %158 = vmatprep.subr.mxu0 0.0
    %159 = vmatpush1.msra.mxu0 0.0
    %160 = vmatprep.mubr.f32.mxu0 0.0
    %161 = vmatmul.mubr.f32.gmra.mrb[0].mxu0 %v94
    %v162 = vpop.f32.mrb[0].mxu0
    %v163 = vadd.f32 %v91, %v162
    %v164 = vpop.f32.mrb[0].mxu0
    %165 = vdwg.mxu0
    %v166 = vsel %vm70, 1, 0
    %vm167 = vcmp.eq.s32.totalorder %v166, 1
    %v168 = vsel %vm167, %v163, 0.0
    %v169 = vld [vmem:[#allocation5 + $0x8] sm:$0xff]
    %v170 = vld [vmem:[#allocation5 + $0x10] sm:$0xff]
    %171 = vrot.lane.b32.xlu0 %v168, 2
    %v172 = vpop.permute.xlu0 %171
    %173 = vrot.lane.b32.xlu0 %v168, 1
    %v174 = vpop.permute.xlu0 %173
    %176 = vset.pattern.permute.xlu0 127
    %177 = vperm.xlu0 %176, %v169
    %v178 = vpop.permute.xlu0 %177
    %181 = vset.pattern.permute.xlu0 127
    %182 = vperm.xlu0 %181, %v170
    %v183 = vpop.permute.xlu0 %182
    %vm185 = vcmask 195584
    %v186 = vsel %vm185, %v169, 0
    %v188 = vsel %vm185, %v170, 0
    %190 = vmatprep.subr.mxu0 0.0
    %191 = vmatpush1.msra.mxu0 %v172
    %192 = vmatprep.subr.mxu0 0.0
    %193 = vmatpush1.msra.mxu0 %v174
    %194 = vmatprep.subr.mxu0 0.0
    %195 = vmatpush1.msra.mxu0 %v168
    %196 = vmatprep.subr.mxu0 0.0
    %197 = vmatpush1.msra.mxu0 0.0
    %198 = vmatprep.subr.mxu0 0.0
    %199 = vmatpush1.msra.mxu0 0.0
    %200 = vmatprep.subr.mxu0 0.0
    %201 = vmatpush1.msra.mxu0 0.0
    %202 = vmatprep.subr.mxu0 0.0
    %203 = vmatpush1.msra.mxu0 0.0
    %204 = vmatprep.subr.mxu0 0.0
    %205 = vmatpush1.msra.mxu0 0.0
    %206 = vmatprep.subr.mxu0 0.0
    %207 = vmatpush1.msra.mxu0 0.0
    %208 = vmatprep.subr.mxu0 0.0
    %209 = vmatpush1.msra.mxu0 0.0
    %210 = vmatprep.subr.mxu0 0.0
    %211 = vmatpush1.msra.mxu0 0.0
    %212 = vmatprep.subr.mxu0 0.0
    %213 = vmatpush1.msra.mxu0 0.0
    %214 = vmatprep.subr.mxu0 0.0
    %215 = vmatpush1.msra.mxu0 0.0
    %216 = vmatprep.subr.mxu0 0.0
    %217 = vmatpush1.msra.mxu0 0.0
    %218 = vmatprep.subr.mxu0 0.0
    %219 = vmatpush1.msra.mxu0 0.0
    %220 = vmatprep.subr.mxu0 0.0
    %221 = vmatpush1.msra.mxu0 0.0
    %222 = vmatprep.subr.mxu0 0.0
    %223 = vmatpush1.msra.mxu0 0.0
    %224 = vmatprep.subr.mxu0 0.0
    %225 = vmatpush1.msra.mxu0 0.0
    %226 = vmatprep.subr.mxu0 0.0
    %227 = vmatpush1.msra.mxu0 0.0
    %228 = vmatprep.subr.mxu0 0.0
    %229 = vmatpush1.msra.mxu0 0.0
    %230 = vmatprep.subr.mxu0 0.0
    %231 = vmatpush1.msra.mxu0 0.0
    %232 = vmatprep.subr.mxu0 0.0
    %233 = vmatpush1.msra.mxu0 0.0
    %234 = vmatprep.subr.mxu0 0.0
    %235 = vmatpush1.msra.mxu0 0.0
    %236 = vmatprep.subr.mxu0 0.0
    %237 = vmatpush1.msra.mxu0 0.0
    %238 = vmatprep.subr.mxu0 0.0
    %239 = vmatpush1.msra.mxu0 0.0
    %240 = vmatprep.subr.mxu0 0.0
    %241 = vmatpush1.msra.mxu0 0.0
    %242 = vmatprep.subr.mxu0 0.0
    %243 = vmatpush1.msra.mxu0 0.0
    %244 = vmatprep.subr.mxu0 0.0
    %245 = vmatpush1.msra.mxu0 0.0
    %246 = vmatprep.subr.mxu0 0.0
    %247 = vmatpush1.msra.mxu0 0.0
    %248 = vmatprep.subr.mxu0 0.0
    %249 = vmatpush1.msra.mxu0 0.0
    %250 = vmatprep.subr.mxu0 0.0
    %251 = vmatpush1.msra.mxu0 0.0
    %252 = vmatprep.subr.mxu0 0.0
    %253 = vmatpush1.msra.mxu0 0.0
    %254 = vmatprep.mubr.f32.mxu0 0.0
    %255 = vmatmul.mubr.f32.gmra.mrb[0].mxu0 %v186
    %v256 = vpop.f32.mrb[0].mxu0
    %v257 = vadd.f32 %v178, %v256
    %v258 = vpop.f32.mrb[0].mxu0
    %259 = vmatprep.mubr.f32.mxu0 0.0
    %260 = vmatmul.mubr.f32.gmra.mrb[0].mxu0 %v188
    %v261 = vpop.f32.mrb[0].mxu0
    %v262 = vadd.f32 %v183, %v261
    %v263 = vpop.f32.mrb[0].mxu0
    %264 = vdwg.mxu0
    %v265 = vmax.f32 %v257, 0.0
    %v266 = vmax.f32 %v262, 0.0
    %v267 = vsel %vm167, %v265, 0.0
    %v268 = vsel %vm167, %v266, 0.0
    %v269 = vld [vmem:[#allocation5 + $0x18] sm:$0xff]
    %v270 = vld [vmem:[#allocation5 + $0x20] sm:$0xff]
    %271 = vrot.lane.b32.xlu0 %v267, 4
    %v272 = vpop.permute.xlu0 %271
    %273 = vrot.lane.b32.xlu0 %v268, 4
    %v274 = vpop.permute.xlu0 %273
    %275 = vrot.lane.b32.xlu0 %v267, 2
    %v276 = vpop.permute.xlu0 %275
    %277 = vrot.lane.b32.xlu0 %v268, 2
    %v278 = vpop.permute.xlu0 %277
    %280 = vset.pattern.permute.xlu0 127
    %281 = vperm.xlu0 %280, %v269
    %v282 = vpop.permute.xlu0 %281
    %285 = vset.pattern.permute.xlu0 127
    %286 = vperm.xlu0 %285, %v270
    %v287 = vpop.permute.xlu0 %286
    %vm289 = vcmask 392192
    %v290 = vsel %vm289, %v269, 0
    %v292 = vsel %vm289, %v270, 0
    %294 = vmatprep.subr.mxu0 0.0
    %295 = vmatpush1.msra.mxu0 %v272
    %296 = vmatprep.subr.mxu0 0.0
    %297 = vmatpush1.msra.mxu0 %v274
    %298 = vmatprep.subr.mxu0 0.0
    %299 = vmatpush1.msra.mxu0 %v276
    %300 = vmatprep.subr.mxu0 0.0
    %301 = vmatpush1.msra.mxu0 %v278
    %302 = vmatprep.subr.mxu0 0.0
    %303 = vmatpush1.msra.mxu0 %v267
    %304 = vmatprep.subr.mxu0 0.0
    %305 = vmatpush1.msra.mxu0 %v268
    %306 = vmatprep.subr.mxu0 0.0
    %307 = vmatpush1.msra.mxu0 0.0
    %308 = vmatprep.subr.mxu0 0.0
    %309 = vmatpush1.msra.mxu0 0.0
    %310 = vmatprep.subr.mxu0 0.0
    %311 = vmatpush1.msra.mxu0 0.0
    %312 = vmatprep.subr.mxu0 0.0
    %313 = vmatpush1.msra.mxu0 0.0
    %314 = vmatprep.subr.mxu0 0.0
    %315 = vmatpush1.msra.mxu0 0.0
    %316 = vmatprep.subr.mxu0 0.0
    %317 = vmatpush1.msra.mxu0 0.0
    %318 = vmatprep.subr.mxu0 0.0
    %319 = vmatpush1.msra.mxu0 0.0
    %320 = vmatprep.subr.mxu0 0.0
    %321 = vmatpush1.msra.mxu0 0.0
    %322 = vmatprep.subr.mxu0 0.0
    %323 = vmatpush1.msra.mxu0 0.0
    %324 = vmatprep.subr.mxu0 0.0
    %325 = vmatpush1.msra.mxu0 0.0
    %326 = vmatprep.subr.mxu0 0.0
    %327 = vmatpush1.msra.mxu0 0.0
    %328 = vmatprep.subr.mxu0 0.0
    %329 = vmatpush1.msra.mxu0 0.0
    %330 = vmatprep.subr.mxu0 0.0
    %331 = vmatpush1.msra.mxu0 0.0
    %332 = vmatprep.subr.mxu0 0.0
    %333 = vmatpush1.msra.mxu0 0.0
    %334 = vmatprep.subr.mxu0 0.0
    %335 = vmatpush1.msra.mxu0 0.0
    %336 = vmatprep.subr.mxu0 0.0
    %337 = vmatpush1.msra.mxu0 0.0
    %338 = vmatprep.subr.mxu0 0.0
    %339 = vmatpush1.msra.mxu0 0.0
    %340 = vmatprep.subr.mxu0 0.0
    %341 = vmatpush1.msra.mxu0 0.0
    %342 = vmatprep.subr.mxu0 0.0
    %343 = vmatpush1.msra.mxu0 0.0
    %344 = vmatprep.subr.mxu0 0.0
    %345 = vmatpush1.msra.mxu0 0.0
    %346 = vmatprep.subr.mxu0 0.0
    %347 = vmatpush1.msra.mxu0 0.0
    %348 = vmatprep.subr.mxu0 0.0
    %349 = vmatpush1.msra.mxu0 0.0
    %350 = vmatprep.subr.mxu0 0.0
    %351 = vmatpush1.msra.mxu0 0.0
    %352 = vmatprep.subr.mxu0 0.0
    %353 = vmatpush1.msra.mxu0 0.0
    %354 = vmatprep.subr.mxu0 0.0
    %355 = vmatpush1.msra.mxu0 0.0
    %356 = vmatprep.subr.mxu0 0.0
    %357 = vmatpush1.msra.mxu0 0.0
    %358 = vmatprep.mubr.f32.mxu0 0.0
    %359 = vmatmul.mubr.f32.gmra.mrb[0].mxu0 %v290
    %v360 = vpop.f32.mrb[0].mxu0
    %v361 = vadd.f32 %v282, %v360
    %v362 = vpop.f32.mrb[0].mxu0
    %363 = vmatprep.mubr.f32.mxu0 0.0
    %364 = vmatmul.mubr.f32.gmra.mrb[0].mxu0 %v292
    %v365 = vpop.f32.mrb[0].mxu0
    %v366 = vadd.f32 %v287, %v365
    %v367 = vpop.f32.mrb[0].mxu0
    %368 = vdwg.mxu0
    %v369 = vmax.f32 %v361, 0.0
    %v370 = vmax.f32 %v366, 0.0
    %v371 = vsel %vm167, %v369, 0.0
    %v372 = vsel %vm167, %v370, 0.0
    %v373 = vld [vmem:[#allocation5 + $0x28] sm:$0xff]
    %v374 = vld [vmem:[#allocation5 + $0x30] sm:$0xff]
    %v375 = vld [vmem:[#allocation5 + $0x38] sm:$0xff]
    %v376 = vld [vmem:[#allocation5 + $0x40] sm:$0xff]
    %377 = vrot.lane.b32.xlu0 %v371, 2
    %v378 = vpop.permute.xlu0 %377
    %379 = vrot.lane.b32.xlu0 %v372, 2
    %v380 = vpop.permute.xlu0 %379
    %381 = vrot.lane.b32.xlu0 %v371, 1
    %v382 = vpop.permute.xlu0 %381
    %383 = vrot.lane.b32.xlu0 %v372, 1
    %v384 = vpop.permute.xlu0 %383
    %386 = vset.pattern.permute.xlu0 127
    %387 = vperm.xlu0 %386, %v373
    %v388 = vpop.permute.xlu0 %387
    %391 = vset.pattern.permute.xlu0 127
    %392 = vperm.xlu0 %391, %v374
    %v393 = vpop.permute.xlu0 %392
    %396 = vset.pattern.permute.xlu0 127
    %397 = vperm.xlu0 %396, %v375
    %v398 = vpop.permute.xlu0 %397
    %401 = vset.pattern.permute.xlu0 127
    %402 = vperm.xlu0 %401, %v376
    %v403 = vpop.permute.xlu0 %402
    %v405 = vsel %vm289, %v373, 0
    %v407 = vsel %vm289, %v374, 0
    %v409 = vsel %vm289, %v375, 0
    %v411 = vsel %vm289, %v376, 0
    %413 = vmatprep.subr.mxu0 0.0
    %414 = vmatpush1.msra.mxu0 %v378
    %415 = vmatprep.subr.mxu0 0.0
    %416 = vmatpush1.msra.mxu0 %v380
    %417 = vmatprep.subr.mxu0 0.0
    %418 = vmatpush1.msra.mxu0 %v382
    %419 = vmatprep.subr.mxu0 0.0
    %420 = vmatpush1.msra.mxu0 %v384
    %421 = vmatprep.subr.mxu0 0.0
    %422 = vmatpush1.msra.mxu0 %v371
    %423 = vmatprep.subr.mxu0 0.0
    %424 = vmatpush1.msra.mxu0 %v372
    %425 = vmatprep.subr.mxu0 0.0
    %426 = vmatpush1.msra.mxu0 0.0
    %427 = vmatprep.subr.mxu0 0.0
    %428 = vmatpush1.msra.mxu0 0.0
    %429 = vmatprep.subr.mxu0 0.0
    %430 = vmatpush1.msra.mxu0 0.0
    %431 = vmatprep.subr.mxu0 0.0
    %432 = vmatpush1.msra.mxu0 0.0
    %433 = vmatprep.subr.mxu0 0.0
    %434 = vmatpush1.msra.mxu0 0.0
    %435 = vmatprep.subr.mxu0 0.0
    %436 = vmatpush1.msra.mxu0 0.0
    %437 = vmatprep.subr.mxu0 0.0
    %438 = vmatpush1.msra.mxu0 0.0
    %439 = vmatprep.subr.mxu0 0.0
    %440 = vmatpush1.msra.mxu0 0.0
    %441 = vmatprep.subr.mxu0 0.0
    %442 = vmatpush1.msra.mxu0 0.0
    %443 = vmatprep.subr.mxu0 0.0
    %444 = vmatpush1.msra.mxu0 0.0
    %445 = vmatprep.subr.mxu0 0.0
    %446 = vmatpush1.msra.mxu0 0.0
    %447 = vmatprep.subr.mxu0 0.0
    %448 = vmatpush1.msra.mxu0 0.0
    %449 = vmatprep.subr.mxu0 0.0
    %450 = vmatpush1.msra.mxu0 0.0
    %451 = vmatprep.subr.mxu0 0.0
    %452 = vmatpush1.msra.mxu0 0.0
    %453 = vmatprep.subr.mxu0 0.0
    %454 = vmatpush1.msra.mxu0 0.0
    %455 = vmatprep.subr.mxu0 0.0
    %456 = vmatpush1.msra.mxu0 0.0
    %457 = vmatprep.subr.mxu0 0.0
    %458 = vmatpush1.msra.mxu0 0.0
    %459 = vmatprep.subr.mxu0 0.0
    %460 = vmatpush1.msra.mxu0 0.0
    %461 = vmatprep.subr.mxu0 0.0
    %462 = vmatpush1.msra.mxu0 0.0
    %463 = vmatprep.subr.mxu0 0.0
    %464 = vmatpush1.msra.mxu0 0.0
    %465 = vmatprep.subr.mxu0 0.0
    %466 = vmatpush1.msra.mxu0 0.0
    %467 = vmatprep.subr.mxu0 0.0
    %468 = vmatpush1.msra.mxu0 0.0
    %469 = vmatprep.subr.mxu0 0.0
    %470 = vmatpush1.msra.mxu0 0.0
    %471 = vmatprep.subr.mxu0 0.0
    %472 = vmatpush1.msra.mxu0 0.0
    %473 = vmatprep.subr.mxu0 0.0
    %474 = vmatpush1.msra.mxu0 0.0
    %475 = vmatprep.subr.mxu0 0.0
    %476 = vmatpush1.msra.mxu0 0.0
    %477 = vmatprep.mubr.f32.mxu0 0.0
    %478 = vmatmul.mubr.f32.gmra.mrb[0].mxu0 %v405
    %v479 = vpop.f32.mrb[0].mxu0
    %v480 = vadd.f32 %v388, %v479
    %v481 = vpop.f32.mrb[0].mxu0
    %482 = vmatprep.mubr.f32.mxu0 0.0
    %483 = vmatmul.mubr.f32.gmra.mrb[0].mxu0 %v407
    %v484 = vpop.f32.mrb[0].mxu0
    %v485 = vadd.f32 %v393, %v484
    %v486 = vpop.f32.mrb[0].mxu0
    %487 = vmatprep.mubr.f32.mxu0 0.0
    %488 = vmatmul.mubr.f32.gmra.mrb[0].mxu0 %v409
    %v489 = vpop.f32.mrb[0].mxu0
    %v490 = vadd.f32 %v398, %v489
    %v491 = vpop.f32.mrb[0].mxu0
    %492 = vmatprep.mubr.f32.mxu0 0.0
    %493 = vmatmul.mubr.f32.gmra.mrb[0].mxu0 %v411
    %v494 = vpop.f32.mrb[0].mxu0
    %v495 = vadd.f32 %v403, %v494
    %v496 = vpop.f32.mrb[0].mxu0
    %497 = vdwg.mxu0
    %v498 = vmax.f32 %v480, 0.0
    %v499 = vmax.f32 %v485, 0.0
    %v500 = vmax.f32 %v490, 0.0
    %v501 = vmax.f32 %v495, 0.0
    %v502 = vsel %vm167, %v498, 0.0
    %v503 = vsel %vm167, %v499, 0.0
    %v504 = vsel %vm167, %v500, 0.0
    %v505 = vsel %vm167, %v501, 0.0
    %v506 = vld [vmem:[#allocation5 + $0x48] sm:$0xff]
    %v507 = vld [vmem:[#allocation5 + $0x50] sm:$0xff]
    %508 = vrot.lane.b32.xlu0 %v502, 2
    %v509 = vpop.permute.xlu0 %508
    %510 = vrot.lane.b32.xlu0 %v503, 2
    %v511 = vpop.permute.xlu0 %510
    %512 = vrot.lane.b32.xlu0 %v504, 2
    %v513 = vpop.permute.xlu0 %512
    %514 = vrot.lane.b32.xlu0 %v505, 2
    %v515 = vpop.permute.xlu0 %514
    %516 = vrot.lane.b32.xlu0 %v502, 1
    %v517 = vpop.permute.xlu0 %516
    %518 = vrot.lane.b32.xlu0 %v503, 1
    %v519 = vpop.permute.xlu0 %518
    %520 = vrot.lane.b32.xlu0 %v504, 1
    %v521 = vpop.permute.xlu0 %520
    %522 = vrot.lane.b32.xlu0 %v505, 1
    %v523 = vpop.permute.xlu0 %522
    %525 = vset.pattern.permute.xlu0 127
    %526 = vperm.xlu0 %525, %v506
    %v527 = vpop.permute.xlu0 %526
    %530 = vset.pattern.permute.xlu0 127
    %531 = vperm.xlu0 %530, %v507
    %v532 = vpop.permute.xlu0 %531
    %vm534 = vcmask 785408
    %v535 = vsel %vm534, %v506, 0
    %v537 = vsel %vm534, %v507, 0
    %539 = vmatprep.subr.mxu0 0.0
    %540 = vmatpush1.msra.mxu0 %v509
    %541 = vmatprep.subr.mxu0 0.0
    %542 = vmatpush1.msra.mxu0 %v511
    %543 = vmatprep.subr.mxu0 0.0
    %544 = vmatpush1.msra.mxu0 %v513
    %545 = vmatprep.subr.mxu0 0.0
    %546 = vmatpush1.msra.mxu0 %v515
    %547 = vmatprep.subr.mxu0 0.0
    %548 = vmatpush1.msra.mxu0 %v517
    %549 = vmatprep.subr.mxu0 0.0
    %550 = vmatpush1.msra.mxu0 %v519
    %551 = vmatprep.subr.mxu0 0.0
    %552 = vmatpush1.msra.mxu0 %v521
    %553 = vmatprep.subr.mxu0 0.0
    %554 = vmatpush1.msra.mxu0 %v523
    %555 = vmatprep.subr.mxu0 0.0
    %556 = vmatpush1.msra.mxu0 %v502
    %557 = vmatprep.subr.mxu0 0.0
    %558 = vmatpush1.msra.mxu0 %v503
    %559 = vmatprep.subr.mxu0 0.0
    %560 = vmatpush1.msra.mxu0 %v504
    %561 = vmatprep.subr.mxu0 0.0
    %562 = vmatpush1.msra.mxu0 %v505
    %563 = vmatprep.subr.mxu0 0.0
    %564 = vmatpush1.msra.mxu0 0.0
    %565 = vmatprep.subr.mxu0 0.0
    %566 = vmatpush1.msra.mxu0 0.0
    %567 = vmatprep.subr.mxu0 0.0
    %568 = vmatpush1.msra.mxu0 0.0
    %569 = vmatprep.subr.mxu0 0.0
    %570 = vmatpush1.msra.mxu0 0.0
    %571 = vmatprep.subr.mxu0 0.0
    %572 = vmatpush1.msra.mxu0 0.0
    %573 = vmatprep.subr.mxu0 0.0
    %574 = vmatpush1.msra.mxu0 0.0
    %575 = vmatprep.subr.mxu0 0.0
    %576 = vmatpush1.msra.mxu0 0.0
    %577 = vmatprep.subr.mxu0 0.0
    %578 = vmatpush1.msra.mxu0 0.0
    %579 = vmatprep.subr.mxu0 0.0
    %580 = vmatpush1.msra.mxu0 0.0
    %581 = vmatprep.subr.mxu0 0.0
    %582 = vmatpush1.msra.mxu0 0.0
    %583 = vmatprep.subr.mxu0 0.0
    %584 = vmatpush1.msra.mxu0 0.0
    %585 = vmatprep.subr.mxu0 0.0
    %586 = vmatpush1.msra.mxu0 0.0
    %587 = vmatprep.subr.mxu0 0.0
    %588 = vmatpush1.msra.mxu0 0.0
    %589 = vmatprep.subr.mxu0 0.0
    %590 = vmatpush1.msra.mxu0 0.0
    %591 = vmatprep.subr.mxu0 0.0
    %592 = vmatpush1.msra.mxu0 0.0
    %593 = vmatprep.subr.mxu0 0.0
    %594 = vmatpush1.msra.mxu0 0.0
    %595 = vmatprep.subr.mxu0 0.0
    %596 = vmatpush1.msra.mxu0 0.0
    %597 = vmatprep.subr.mxu0 0.0
    %598 = vmatpush1.msra.mxu0 0.0
    %599 = vmatprep.subr.mxu0 0.0
    %600 = vmatpush1.msra.mxu0 0.0
    %601 = vmatprep.subr.mxu0 0.0
    %602 = vmatpush1.msra.mxu0 0.0
    %603 = vmatprep.mubr.f32.mxu0 0.0
    %604 = vmatmul.mubr.f32.gmra.mrb[0].mxu0 %v535
    %v605 = vpop.f32.mrb[0].mxu0
    %v606 = vadd.f32 %v527, %v605
    %v607 = vpop.f32.mrb[0].mxu0
    %608 = vmatprep.mubr.f32.mxu0 0.0
    %609 = vmatmul.mubr.f32.gmra.mrb[0].mxu0 %v537
    %v610 = vpop.f32.mrb[0].mxu0
    %v611 = vadd.f32 %v532, %v610
    %v612 = vpop.f32.mrb[0].mxu0
    %613 = vdwg.mxu0
    %v614 = vmax.f32 %v606, 0.0
    %v615 = vmax.f32 %v611, 0.0
    %v616 = vsel %vm167, %v614, 0.0
    %v617 = vsel %vm167, %v615, 0.0
    %v618 = vld [vmem:[#allocation5 + $0x58] sm:$0xff]
    %v619 = vld [vmem:[#allocation5 + $0x60] sm:$0xff]
    %v620 = vld [vmem:[#allocation5 + $0x68] sm:$0xff]
    %v621 = vld [vmem:[#allocation5 + $0x70] sm:$0xff]
    %622 = vrot.lane.b32.xlu0 %v616, 2
    %v623 = vpop.permute.xlu0 %622
    %624 = vrot.lane.b32.xlu0 %v617, 2
    %v625 = vpop.permute.xlu0 %624
    %626 = vrot.lane.b32.xlu0 %v616, 1
    %v627 = vpop.permute.xlu0 %626
    %628 = vrot.lane.b32.xlu0 %v617, 1
    %v629 = vpop.permute.xlu0 %628
    %631 = vset.pattern.permute.xlu0 127
    %632 = vperm.xlu0 %631, %v618
    %v633 = vpop.permute.xlu0 %632
    %636 = vset.pattern.permute.xlu0 127
    %637 = vperm.xlu0 %636, %v619
    %v638 = vpop.permute.xlu0 %637
    %641 = vset.pattern.permute.xlu0 127
    %642 = vperm.xlu0 %641, %v620
    %v643 = vpop.permute.xlu0 %642
    %646 = vset.pattern.permute.xlu0 127
    %647 = vperm.xlu0 %646, %v621
    %v648 = vpop.permute.xlu0 %647
    %v650 = vsel %vm289, %v618, 0
    %v652 = vsel %vm289, %v619, 0
    %v654 = vsel %vm289, %v620, 0
    %v656 = vsel %vm289, %v621, 0
    %658 = vmatprep.subr.mxu0 0.0
    %659 = vmatpush1.msra.mxu0 %v623
    %660 = vmatprep.subr.mxu0 0.0
    %661 = vmatpush1.msra.mxu0 %v625
    %662 = vmatprep.subr.mxu0 0.0
    %663 = vmatpush1.msra.mxu0 %v627
    %664 = vmatprep.subr.mxu0 0.0
    %665 = vmatpush1.msra.mxu0 %v629
    %666 = vmatprep.subr.mxu0 0.0
    %667 = vmatpush1.msra.mxu0 %v616
    %668 = vmatprep.subr.mxu0 0.0
    %669 = vmatpush1.msra.mxu0 %v617
    %670 = vmatprep.subr.mxu0 0.0
    %671 = vmatpush1.msra.mxu0 0.0
    %672 = vmatprep.subr.mxu0 0.0
    %673 = vmatpush1.msra.mxu0 0.0
    %674 = vmatprep.subr.mxu0 0.0
    %675 = vmatpush1.msra.mxu0 0.0
    %676 = vmatprep.subr.mxu0 0.0
    %677 = vmatpush1.msra.mxu0 0.0
    %678 = vmatprep.subr.mxu0 0.0
    %679 = vmatpush1.msra.mxu0 0.0
    %680 = vmatprep.subr.mxu0 0.0
    %681 = vmatpush1.msra.mxu0 0.0
    %682 = vmatprep.subr.mxu0 0.0
    %683 = vmatpush1.msra.mxu0 0.0
    %684 = vmatprep.subr.mxu0 0.0
    %685 = vmatpush1.msra.mxu0 0.0
    %686 = vmatprep.subr.mxu0 0.0
    %687 = vmatpush1.msra.mxu0 0.0
    %688 = vmatprep.subr.mxu0 0.0
    %689 = vmatpush1.msra.mxu0 0.0
    %690 = vmatprep.subr.mxu0 0.0
    %691 = vmatpush1.msra.mxu0 0.0
    %692 = vmatprep.subr.mxu0 0.0
    %693 = vmatpush1.msra.mxu0 0.0
    %694 = vmatprep.subr.mxu0 0.0
    %695 = vmatpush1.msra.mxu0 0.0
    %696 = vmatprep.subr.mxu0 0.0
    %697 = vmatpush1.msra.mxu0 0.0
    %698 = vmatprep.subr.mxu0 0.0
    %699 = vmatpush1.msra.mxu0 0.0
    %700 = vmatprep.subr.mxu0 0.0
    %701 = vmatpush1.msra.mxu0 0.0
    %702 = vmatprep.subr.mxu0 0.0
    %703 = vmatpush1.msra.mxu0 0.0
    %704 = vmatprep.subr.mxu0 0.0
    %705 = vmatpush1.msra.mxu0 0.0
    %706 = vmatprep.subr.mxu0 0.0
    %707 = vmatpush1.msra.mxu0 0.0
    %708 = vmatprep.subr.mxu0 0.0
    %709 = vmatpush1.msra.mxu0 0.0
    %710 = vmatprep.subr.mxu0 0.0
    %711 = vmatpush1.msra.mxu0 0.0
    %712 = vmatprep.subr.mxu0 0.0
    %713 = vmatpush1.msra.mxu0 0.0
    %714 = vmatprep.subr.mxu0 0.0
    %715 = vmatpush1.msra.mxu0 0.0
    %716 = vmatprep.subr.mxu0 0.0
    %717 = vmatpush1.msra.mxu0 0.0
    %718 = vmatprep.subr.mxu0 0.0
    %719 = vmatpush1.msra.mxu0 0.0
    %720 = vmatprep.subr.mxu0 0.0
    %721 = vmatpush1.msra.mxu0 0.0
    %722 = vmatprep.mubr.f32.mxu0 0.0
    %723 = vmatmul.mubr.f32.gmra.mrb[0].mxu0 %v650
    %v724 = vpop.f32.mrb[0].mxu0
    %v725 = vadd.f32 %v633, %v724
    %v726 = vpop.f32.mrb[0].mxu0
    %727 = vmatprep.mubr.f32.mxu0 0.0
    %728 = vmatmul.mubr.f32.gmra.mrb[0].mxu0 %v652
    %v729 = vpop.f32.mrb[0].mxu0
    %v730 = vadd.f32 %v638, %v729
    %v731 = vpop.f32.mrb[0].mxu0
    %732 = vmatprep.mubr.f32.mxu0 0.0
    %733 = vmatmul.mubr.f32.gmra.mrb[0].mxu0 %v654
    %v734 = vpop.f32.mrb[0].mxu0
    %v735 = vadd.f32 %v643, %v734
    %v736 = vpop.f32.mrb[0].mxu0
    %737 = vmatprep.mubr.f32.mxu0 0.0
    %738 = vmatmul.mubr.f32.gmra.mrb[0].mxu0 %v656
    %v739 = vpop.f32.mrb[0].mxu0
    %v740 = vadd.f32 %v648, %v739
    %v741 = vpop.f32.mrb[0].mxu0
    %742 = vdwg.mxu0
    %v743 = vadd.f32 %v725, %v502
    %v744 = vadd.f32 %v730, %v503
    %v745 = vadd.f32 %v735, %v504
    %v746 = vadd.f32 %v740, %v505
    %v747 = vmax.f32 %v743, 0.0
    %v748 = vmax.f32 %v744, 0.0
    %v749 = vmax.f32 %v745, 0.0
    %v750 = vmax.f32 %v746, 0.0
    %v751 = vsel %vm167, %v747, 0.0
    %v752 = vsel %vm167, %v748, 0.0
    %v753 = vsel %vm167, %v749, 0.0
    %v754 = vsel %vm167, %v750, 0.0
    %v755 = vld [vmem:[#allocation5 + $0x78] sm:$0xff]
    %v756 = vld [vmem:[#allocation5 + $0x80] sm:$0xff]
    %757 = vrot.lane.b32.xlu0 %v751, 2
    %v758 = vpop.permute.xlu0 %757
    %759 = vrot.lane.b32.xlu0 %v752, 2
    %v760 = vpop.permute.xlu0 %759
    %761 = vrot.lane.b32.xlu0 %v753, 2
    %v762 = vpop.permute.xlu0 %761
    %763 = vrot.lane.b32.xlu0 %v754, 2
    %v764 = vpop.permute.xlu0 %763
    %765 = vrot.lane.b32.xlu0 %v751, 1
    %v766 = vpop.permute.xlu0 %765
    %767 = vrot.lane.b32.xlu0 %v752, 1
    %v768 = vpop.permute.xlu0 %767
    %769 = vrot.lane.b32.xlu0 %v753, 1
    %v770 = vpop.permute.xlu0 %769
    %771 = vrot.lane.b32.xlu0 %v754, 1
    %v772 = vpop.permute.xlu0 %771
    %774 = vset.pattern.permute.xlu0 127
    %775 = vperm.xlu0 %774, %v755
    %v776 = vpop.permute.xlu0 %775
    %779 = vset.pattern.permute.xlu0 127
    %780 = vperm.xlu0 %779, %v756
    %v781 = vpop.permute.xlu0 %780
    %v783 = vsel %vm534, %v755, 0
    %v785 = vsel %vm534, %v756, 0
    %787 = vmatprep.subr.mxu0 0.0
    %788 = vmatpush1.msra.mxu0 %v758
    %789 = vmatprep.subr.mxu0 0.0
    %790 = vmatpush1.msra.mxu0 %v760
    %791 = vmatprep.subr.mxu0 0.0
    %792 = vmatpush1.msra.mxu0 %v762
    %793 = vmatprep.subr.mxu0 0.0
    %794 = vmatpush1.msra.mxu0 %v764
    %795 = vmatprep.subr.mxu0 0.0
    %796 = vmatpush1.msra.mxu0 %v766
    %797 = vmatprep.subr.mxu0 0.0
    %798 = vmatpush1.msra.mxu0 %v768
    %799 = vmatprep.subr.mxu0 0.0
    %800 = vmatpush1.msra.mxu0 %v770
    %801 = vmatprep.subr.mxu0 0.0
    %802 = vmatpush1.msra.mxu0 %v772
    %803 = vmatprep.subr.mxu0 0.0
    %804 = vmatpush1.msra.mxu0 %v751
    %805 = vmatprep.subr.mxu0 0.0
    %806 = vmatpush1.msra.mxu0 %v752
    %807 = vmatprep.subr.mxu0 0.0
    %808 = vmatpush1.msra.mxu0 %v753
    %809 = vmatprep.subr.mxu0 0.0
    %810 = vmatpush1.msra.mxu0 %v754
    %811 = vmatprep.subr.mxu0 0.0
    %812 = vmatpush1.msra.mxu0 0.0
    %813 = vmatprep.subr.mxu0 0.0
    %814 = vmatpush1.msra.mxu0 0.0
    %815 = vmatprep.subr.mxu0 0.0
    %816 = vmatpush1.msra.mxu0 0.0
    %817 = vmatprep.subr.mxu0 0.0
    %818 = vmatpush1.msra.mxu0 0.0
    %819 = vmatprep.subr.mxu0 0.0
    %820 = vmatpush1.msra.mxu0 0.0
    %821 = vmatprep.subr.mxu0 0.0
    %822 = vmatpush1.msra.mxu0 0.0
    %823 = vmatprep.subr.mxu0 0.0
    %824 = vmatpush1.msra.mxu0 0.0
    %825 = vmatprep.subr.mxu0 0.0
    %826 = vmatpush1.msra.mxu0 0.0
    %827 = vmatprep.subr.mxu0 0.0
    %828 = vmatpush1.msra.mxu0 0.0
    %829 = vmatprep.subr.mxu0 0.0
    %830 = vmatpush1.msra.mxu0 0.0
    %831 = vmatprep.subr.mxu0 0.0
    %832 = vmatpush1.msra.mxu0 0.0
    %833 = vmatprep.subr.mxu0 0.0
    %834 = vmatpush1.msra.mxu0 0.0
    %835 = vmatprep.subr.mxu0 0.0
    %836 = vmatpush1.msra.mxu0 0.0
    %837 = vmatprep.subr.mxu0 0.0
    %838 = vmatpush1.msra.mxu0 0.0
    %839 = vmatprep.subr.mxu0 0.0
    %840 = vmatpush1.msra.mxu0 0.0
    %841 = vmatprep.subr.mxu0 0.0
    %842 = vmatpush1.msra.mxu0 0.0
    %843 = vmatprep.subr.mxu0 0.0
    %844 = vmatpush1.msra.mxu0 0.0
    %845 = vmatprep.subr.mxu0 0.0
    %846 = vmatpush1.msra.mxu0 0.0
    %847 = vmatprep.subr.mxu0 0.0
    %848 = vmatpush1.msra.mxu0 0.0
    %849 = vmatprep.subr.mxu0 0.0
    %850 = vmatpush1.msra.mxu0 0.0
    %851 = vmatprep.mubr.f32.mxu0 0.0
    %852 = vmatmul.mubr.f32.gmra.mrb[0].mxu0 %v783
    %v853 = vpop.f32.mrb[0].mxu0
    %v854 = vadd.f32 %v776, %v853
    %v855 = vpop.f32.mrb[0].mxu0
    %856 = vmatprep.mubr.f32.mxu0 0.0
    %857 = vmatmul.mubr.f32.gmra.mrb[0].mxu0 %v785
    %v858 = vpop.f32.mrb[0].mxu0
    %v859 = vadd.f32 %v781, %v858
    %v860 = vpop.f32.mrb[0].mxu0
    %861 = vdwg.mxu0
    %v862 = vmax.f32 %v854, 0.0
    %v863 = vmax.f32 %v859, 0.0
    %v864 = vsel %vm167, %v862, 0.0
    %v865 = vsel %vm167, %v863, 0.0
    %v866 = vld [vmem:[#allocation5 + $0x88] sm:$0xff]
    %v867 = vld [vmem:[#allocation5 + $0x90] sm:$0xff]
    %v868 = vld [vmem:[#allocation5 + $0x98] sm:$0xff]
    %v869 = vld [vmem:[#allocation5 + $0xa0] sm:$0xff]
    %870 = vrot.lane.b32.xlu0 %v864, 2
    %v871 = vpop.permute.xlu0 %870
    %872 = vrot.lane.b32.xlu0 %v865, 2
    %v873 = vpop.permute.xlu0 %872
    %874 = vrot.lane.b32.xlu0 %v864, 1
    %v875 = vpop.permute.xlu0 %874
    %876 = vrot.lane.b32.xlu0 %v865, 1
    %v877 = vpop.permute.xlu0 %876
    %879 = vset.pattern.permute.xlu0 127
    %880 = vperm.xlu0 %879, %v866
    %v881 = vpop.permute.xlu0 %880
    %884 = vset.pattern.permute.xlu0 127
    %885 = vperm.xlu0 %884, %v867
    %v886 = vpop.permute.xlu0 %885
    %889 = vset.pattern.permute.xlu0 127
    %890 = vperm.xlu0 %889, %v868
    %v891 = vpop.permute.xlu0 %890
    %894 = vset.pattern.permute.xlu0 127
    %895 = vperm.xlu0 %894, %v869
    %v896 = vpop.permute.xlu0 %895
    %v898 = vsel %vm289, %v866, 0
    %v900 = vsel %vm289, %v867, 0
    %v902 = vsel %vm289, %v868, 0
    %v904 = vsel %vm289, %v869, 0
    %906 = vmatprep.subr.mxu0 0.0
    %907 = vmatpush1.msra.mxu0 %v871
    %908 = vmatprep.subr.mxu0 0.0
    %909 = vmatpush1.msra.mxu0 %v873
    %910 = vmatprep.subr.mxu0 0.0
    %911 = vmatpush1.msra.mxu0 %v875
    %912 = vmatprep.subr.mxu0 0.0
    %913 = vmatpush1.msra.mxu0 %v877
    %914 = vmatprep.subr.mxu0 0.0
    %915 = vmatpush1.msra.mxu0 %v864
    %916 = vmatprep.subr.mxu0 0.0
    %917 = vmatpush1.msra.mxu0 %v865
    %918 = vmatprep.subr.mxu0 0.0
    %919 = vmatpush1.msra.mxu0 0.0
    %920 = vmatprep.subr.mxu0 0.0
    %921 = vmatpush1.msra.mxu0 0.0
    %922 = vmatprep.subr.mxu0 0.0
    %923 = vmatpush1.msra.mxu0 0.0
    %924 = vmatprep.subr.mxu0 0.0
    %925 = vmatpush1.msra.mxu0 0.0
    %926 = vmatprep.subr.mxu0 0.0
    %927 = vmatpush1.msra.mxu0 0.0
    %928 = vmatprep.subr.mxu0 0.0
    %929 = vmatpush1.msra.mxu0 0.0
    %930 = vmatprep.subr.mxu0 0.0
    %931 = vmatpush1.msra.mxu0 0.0
    %932 = vmatprep.subr.mxu0 0.0
    %933 = vmatpush1.msra.mxu0 0.0
    %934 = vmatprep.subr.mxu0 0.0
    %935 = vmatpush1.msra.mxu0 0.0
    %936 = vmatprep.subr.mxu0 0.0
    %937 = vmatpush1.msra.mxu0 0.0
    %938 = vmatprep.subr.mxu0 0.0
    %939 = vmatpush1.msra.mxu0 0.0
    %940 = vmatprep.subr.mxu0 0.0
    %941 = vmatpush1.msra.mxu0 0.0
    %942 = vmatprep.subr.mxu0 0.0
    %943 = vmatpush1.msra.mxu0 0.0
    %944 = vmatprep.subr.mxu0 0.0
    %945 = vmatpush1.msra.mxu0 0.0
    %946 = vmatprep.subr.mxu0 0.0
    %947 = vmatpush1.msra.mxu0 0.0
    %948 = vmatprep.subr.mxu0 0.0
    %949 = vmatpush1.msra.mxu0 0.0
    %950 = vmatprep.subr.mxu0 0.0
    %951 = vmatpush1.msra.mxu0 0.0
    %952 = vmatprep.subr.mxu0 0.0
    %953 = vmatpush1.msra.mxu0 0.0
    %954 = vmatprep.subr.mxu0 0.0
    %955 = vmatpush1.msra.mxu0 0.0
    %956 = vmatprep.subr.mxu0 0.0
    %957 = vmatpush1.msra.mxu0 0.0
    %958 = vmatprep.subr.mxu0 0.0
    %959 = vmatpush1.msra.mxu0 0.0
    %960 = vmatprep.subr.mxu0 0.0
    %961 = vmatpush1.msra.mxu0 0.0
    %962 = vmatprep.subr.mxu0 0.0
    %963 = vmatpush1.msra.mxu0 0.0
    %964 = vmatprep.subr.mxu0 0.0
    %965 = vmatpush1.msra.mxu0 0.0
    %966 = vmatprep.subr.mxu0 0.0
    %967 = vmatpush1.msra.mxu0 0.0
    %968 = vmatprep.subr.mxu0 0.0
    %969 = vmatpush1.msra.mxu0 0.0
    %970 = vmatprep.mubr.f32.mxu0 0.0
    %971 = vmatmul.mubr.f32.gmra.mrb[0].mxu0 %v898
    %v972 = vpop.f32.mrb[0].mxu0
    %v973 = vadd.f32 %v881, %v972
    %v974 = vpop.f32.mrb[0].mxu0
    %975 = vmatprep.mubr.f32.mxu0 0.0
    %976 = vmatmul.mubr.f32.gmra.mrb[0].mxu0 %v900
    %v977 = vpop.f32.mrb[0].mxu0
    %v978 = vadd.f32 %v886, %v977
    %v979 = vpop.f32.mrb[0].mxu0
    %980 = vmatprep.mubr.f32.mxu0 0.0
    %981 = vmatmul.mubr.f32.gmra.mrb[0].mxu0 %v902
    %v982 = vpop.f32.mrb[0].mxu0
    %v983 = vadd.f32 %v891, %v982
    %v984 = vpop.f32.mrb[0].mxu0
    %985 = vmatprep.mubr.f32.mxu0 0.0
    %986 = vmatmul.mubr.f32.gmra.mrb[0].mxu0 %v904
    %v987 = vpop.f32.mrb[0].mxu0
    %v988 = vadd.f32 %v896, %v987
    %v989 = vpop.f32.mrb[0].mxu0
    %990 = vdwg.mxu0
    %v991 = vadd.f32 %v973, %v751
    %v992 = vadd.f32 %v978, %v752
    %v993 = vadd.f32 %v983, %v753
    %v994 = vadd.f32 %v988, %v754
    %v995 = vmax.f32 %v991, 0.0
    %v996 = vmax.f32 %v992, 0.0
    %v997 = vmax.f32 %v993, 0.0
    %v998 = vmax.f32 %v994, 0.0
    %v999 = vsel %vm167, %v995, 0.0
    %v1000 = vsel %vm167, %v996, 0.0
    %v1001 = vsel %vm167, %v997, 0.0
    %v1002 = vsel %vm167, %v998, 0.0
    %v1003 = vld [vmem:[#allocation5 + $0xa8] sm:$0xff]
    %v1004 = vld [vmem:[#allocation5 + $0xb0] sm:$0xff]
    %1005 = vrot.lane.b32.xlu0 %v999, 2
    %v1006 = vpop.permute.xlu0 %1005
    %1007 = vrot.lane.b32.xlu0 %v1000, 2
    %v1008 = vpop.permute.xlu0 %1007
    %1009 = vrot.lane.b32.xlu0 %v1001, 2
    %v1010 = vpop.permute.xlu0 %1009
    %1011 = vrot.lane.b32.xlu0 %v1002, 2
    %v1012 = vpop.permute.xlu0 %1011
    %1013 = vrot.lane.b32.xlu0 %v999, 1
    %v1014 = vpop.permute.xlu0 %1013
    %1015 = vrot.lane.b32.xlu0 %v1000, 1
    %v1016 = vpop.permute.xlu0 %1015
    %1017 = vrot.lane.b32.xlu0 %v1001, 1
    %v1018 = vpop.permute.xlu0 %1017
    %1019 = vrot.lane.b32.xlu0 %v1002, 1
    %v1020 = vpop.permute.xlu0 %1019
    %1022 = vset.pattern.permute.xlu0 127
    %1023 = vperm.xlu0 %1022, %v1003
    %v1024 = vpop.permute.xlu0 %1023
    %1027 = vset.pattern.permute.xlu0 127
    %1028 = vperm.xlu0 %1027, %v1004
    %v1029 = vpop.permute.xlu0 %1028
    %v1031 = vsel %vm534, %v1003, 0
    %v1033 = vsel %vm534, %v1004, 0
    %1035 = vmatprep.subr.mxu0 0.0
    %1036 = vmatpush1.msra.mxu0 %v1006
    %1037 = vmatprep.subr.mxu0 0.0
    %1038 = vmatpush1.msra.mxu0 %v1008
    %1039 = vmatprep.subr.mxu0 0.0
    %1040 = vmatpush1.msra.mxu0 %v1010
    %1041 = vmatprep.subr.mxu0 0.0
    %1042 = vmatpush1.msra.mxu0 %v1012
    %1043 = vmatprep.subr.mxu0 0.0
    %1044 = vmatpush1.msra.mxu0 %v1014
    %1045 = vmatprep.subr.mxu0 0.0
    %1046 = vmatpush1.msra.mxu0 %v1016
    %1047 = vmatprep.subr.mxu0 0.0
    %1048 = vmatpush1.msra.mxu0 %v1018
    %1049 = vmatprep.subr.mxu0 0.0
    %1050 = vmatpush1.msra.mxu0 %v1020
    %1051 = vmatprep.subr.mxu0 0.0
    %1052 = vmatpush1.msra.mxu0 %v999
    %1053 = vmatprep.subr.mxu0 0.0
    %1054 = vmatpush1.msra.mxu0 %v1000
    %1055 = vmatprep.subr.mxu0 0.0
    %1056 = vmatpush1.msra.mxu0 %v1001
    %1057 = vmatprep.subr.mxu0 0.0
    %1058 = vmatpush1.msra.mxu0 %v1002
    %1059 = vmatprep.subr.mxu0 0.0
    %1060 = vmatpush1.msra.mxu0 0.0
    %1061 = vmatprep.subr.mxu0 0.0
    %1062 = vmatpush1.msra.mxu0 0.0
    %1063 = vmatprep.subr.mxu0 0.0
    %1064 = vmatpush1.msra.mxu0 0.0
    %1065 = vmatprep.subr.mxu0 0.0
    %1066 = vmatpush1.msra.mxu0 0.0
    %1067 = vmatprep.subr.mxu0 0.0
    %1068 = vmatpush1.msra.mxu0 0.0
    %1069 = vmatprep.subr.mxu0 0.0
    %1070 = vmatpush1.msra.mxu0 0.0
    %1071 = vmatprep.subr.mxu0 0.0
    %1072 = vmatpush1.msra.mxu0 0.0
    %1073 = vmatprep.subr.mxu0 0.0
    %1074 = vmatpush1.msra.mxu0 0.0
    %1075 = vmatprep.subr.mxu0 0.0
    %1076 = vmatpush1.msra.mxu0 0.0
    %1077 = vmatprep.subr.mxu0 0.0
    %1078 = vmatpush1.msra.mxu0 0.0
    %1079 = vmatprep.subr.mxu0 0.0
    %1080 = vmatpush1.msra.mxu0 0.0
    %1081 = vmatprep.subr.mxu0 0.0
    %1082 = vmatpush1.msra.mxu0 0.0
    %1083 = vmatprep.subr.mxu0 0.0
    %1084 = vmatpush1.msra.mxu0 0.0
    %1085 = vmatprep.subr.mxu0 0.0
    %1086 = vmatpush1.msra.mxu0 0.0
    %1087 = vmatprep.subr.mxu0 0.0
    %1088 = vmatpush1.msra.mxu0 0.0
    %1089 = vmatprep.subr.mxu0 0.0
    %1090 = vmatpush1.msra.mxu0 0.0
    %1091 = vmatprep.subr.mxu0 0.0
    %1092 = vmatpush1.msra.mxu0 0.0
    %1093 = vmatprep.subr.mxu0 0.0
    %1094 = vmatpush1.msra.mxu0 0.0
    %1095 = vmatprep.subr.mxu0 0.0
    %1096 = vmatpush1.msra.mxu0 0.0
    %1097 = vmatprep.subr.mxu0 0.0
    %1098 = vmatpush1.msra.mxu0 0.0
    %1099 = vmatprep.mubr.f32.mxu0 0.0
    %1100 = vmatmul.mubr.f32.gmra.mrb[0].mxu0 %v1031
    %v1101 = vpop.f32.mrb[0].mxu0
    %v1102 = vadd.f32 %v1024, %v1101
    %v1103 = vpop.f32.mrb[0].mxu0
    %1104 = vmatprep.mubr.f32.mxu0 0.0
    %1105 = vmatmul.mubr.f32.gmra.mrb[0].mxu0 %v1033
    %v1106 = vpop.f32.mrb[0].mxu0
    %v1107 = vadd.f32 %v1029, %v1106
    %v1108 = vpop.f32.mrb[0].mxu0
    %1109 = vdwg.mxu0
    %v1110 = vmax.f32 %v1102, 0.0
    %v1111 = vmax.f32 %v1107, 0.0
    %1114 = vrot.lane.b32.xlu0 %v1110, 102
    %v1115 = vpop.permute.xlu0 %1114
    %1116 = vrot.lane.b32.xlu0 %v1111, 102
    %v1117 = vpop.permute.xlu0 %1116
    %1120 = vrot.lane.b32.xlu0 %v1110, 62
    %v1121 = vpop.permute.xlu0 %1120
    %1122 = vrot.lane.b32.xlu0 %v1111, 62
    %v1123 = vpop.permute.xlu0 %1122
    %v1126 = vsel %vm185, %v1115, %v1121
    %v1127 = vsel %vm185, %v1117, %v1123
    %1128 = vst.msk [vmem:[%s2] sm:$0xff] %vm289, %v1126
    %1129 = vst.msk [vmem:[%s2 + $0x8] sm:$0xff] %vm289, %v1127
    // Predicated region
    $region18: #{generator_forward.1} parent=1 // pred_check
      _
    $region19: #{generator_forward.1} parent=1 // pred_check_branch
      %1131 = sbr.rel (0) target = $region21
    $region20: #{generator_forward.1} parent=1 // pred_region
      _
    $region21: #{generator_forward.1} parent=1 // pred_fallthru
      _
    // Predicated region
    $region22: #{generator_forward.1} parent=1 // pred_check
      _
    $region23: #{generator_forward.1} parent=1 // pred_check_branch
      %1133 = sbr.rel (0) target = $region25
    $region24: #{generator_forward.1} parent=1 // pred_region
      _
    $region25: #{generator_forward.1} parent=1 // pred_fallthru
      _
    %1134 = vsyncpa [#allocation4], 1
    %1135 = vsyncpa [#allocation6], 1

</llo_original>
